<compile_context>
chip_gen: v7x
topology: tpu7x:2x2x1
jax: 0.10.0
libtpu: 0.0.40
codegen_flags: <defaults>
</compile_context>

<pallas_src>
import functools

import jax
import jax.numpy as jnp
from jax.experimental import pallas as pl
from jax.experimental.pallas import tpu as pltpu


def _round_up(x, m):
    return ((x + m - 1) // m) * m


def _pick_hw_tile(hw, want):
    """Largest tile <= want that divides hw and is sublane-aligned (or full extent)."""
    want = min(want, hw)
    for t in range(want, 0, -1):
        if hw % t == 0 and (t % 8 == 0 or t == hw):
            return t
    return hw


def _pick_sub(t_hw, want=128):
    """Largest sub-chunk <= want that divides the HW tile."""
    want = min(want, t_hw)
    for s in range(want, 0, -1):
        if t_hw % s == 0:
            return s
    return t_hw


def _make_kernel(sub):
    def classifier_kernel(patches_ref, wconv_ref, bconv_ref, wfc_ref, bfc_ref,
                          out_ref, acc_ref):
        # patches: [tB, t_hw, K] bf16 (K unpadded)   wconv: [K, Cout_pad] bf16
        # bconv:   [1, Cout_pad] f32                 wfc:   [Cout_pad, NCLS_pad] f32
        # bfc:     [1, NCLS_pad] f32                 out:   [tB, NCLS_pad] f32
        # acc:     [tB, Cout_pad] f32 scratch (pooled feature sums)
        hw = pl.program_id(1)

        @pl.when(hw == 0)
        def _init():
            acc_ref[...] = jnp.zeros_like(acc_ref)

        t_hw = patches_ref.shape[1]
        n_sub = t_hw // sub

        # Hoist resident weight/bias loads out of the inner loop.
        wconv = wconv_ref[...]                       # [K, Cout_pad] bf16
        bconv = bconv_ref[...][None, :, :]           # [1, 1, Cout_pad] f32

        def body(s, acc):
            start = pl.multiple_of(s * sub, sub)
            chunk = patches_ref[:, pl.ds(start, sub), :]          # [tB, sub, K] bf16
            # Conv-as-matmul (bf16 operands, f32 accumulation on the MXU).
            feat = jax.lax.dot_general(
                chunk, wconv,
                dimension_numbers=(((2,), (0,)), ((), ())),
                preferred_element_type=jnp.float32)               # [tB, sub, Cout_pad]
            # Bias + ReLU in f32 on the VPU (v5e has no bf16 VALU).
            feat = jnp.maximum(feat + bconv, 0.0)
            # Plain spatial sum; 1/(H*W) mean scale is folded into wfc.
            return acc + jnp.sum(feat, axis=1)                    # [tB, Cout_pad]

        acc_ref[...] += jax.lax.fori_loop(
            0, n_sub, body, jnp.zeros_like(acc_ref), unroll=True)

        @pl.when(hw == pl.num_programs(1) - 1)
        def _finalize():
            pooled = acc_ref[...]                                 # [tB, Cout_pad]
            logits = jnp.dot(pooled, wfc_ref[...],
                             preferred_element_type=jnp.float32) + bfc_ref[...]
            # Softmax over classes (PyTorch dim=1), kept in f32 so the -1e30 bias on
            # padded classes underflows exp to exactly 0.
            m = jnp.max(logits, axis=-1, keepdims=True)
            e = jnp.exp(logits - m)
            denom = jnp.sum(e, axis=-1, keepdims=True)
            out_ref[...] = e * pl.reciprocal(denom, approx=True)

    return classifier_kernel


def classifier_forward(x_nchw, wconv_hwio, bconv, wfc, bfc, *, t_hw=1024):
    B, Cin, H, W = x_nchw.shape
    Cout = wconv_hwio.shape[-1]
    ncls = wfc.shape[-1]
    HW = H * W
    K = 9 * Cin

    LANE = 128
    Cout_pad = _round_up(Cout, LANE)
    ncls_pad = _round_up(ncls, LANE)

    # Batch tile: multiple of 8 (full sublane occupancy, unmasked output stores).
    tB = 8
    B_pad = _round_up(B, tB)

    # HW tile: biggest multiple-of-8 divisor of HW up to the request.
    t_hw = _pick_hw_tile(HW, t_hw)
    sub = _pick_sub(t_hw, 128)

    # NCHW -> NHWC, zero-pad batch, im2col for a 3x3 / stride 1 / pad 1 conv (plain-JAX
    # glue).  K is NOT padded in HBM -- the kernel streams [tB, t_hw, K] bf16 blocks.
    x = jnp.transpose(x_nchw, (0, 2, 3, 1)).astype(jnp.float32)
    if B_pad != B:
        x = jnp.pad(x, ((0, B_pad - B), (0, 0), (0, 0), (0, 0)))
    xp = jnp.pad(x, ((0, 0), (1, 1), (1, 1), (0, 0)))
    patches = jnp.concatenate(
        [xp[:, kh:kh + H, kw:kw + W, :] for kh in range(3) for kw in range(3)],
        axis=-1).reshape(B_pad, HW, K).astype(jnp.bfloat16)

    # Weights: wconv kept at K rows (tiny, resident in VMEM); Cout / classes padded to
    # 128 so MXU lanes are full and the output store is lane-dense.  Padded wconv cols,
    # bconv entries and wfc rows/cols are 0 (results unchanged); padded bfc entries are
    # -1e30 so padded classes vanish under softmax.  The 1/(H*W) global-average-pool
    # scale is folded into wfc (kernel accumulates plain sums).
    wconv2 = wconv_hwio.reshape(K, Cout)
    wconv_p = (jnp.zeros((K, Cout_pad), jnp.float32)
               .at[:, :Cout].set(wconv2).astype(jnp.bfloat16))
    bconv_p = (jnp.zeros((1, Cout_pad), jnp.float32)
               .at[:, :Cout].set(bconv.reshape(1, Cout)))
    wfc_p = (jnp.zeros((Cout_pad, ncls_pad), jnp.float32)
             .at[:Cout, :ncls].set(wfc / float(HW)))
    bfc_p = (jnp.full((1, ncls_pad), -1e30, jnp.float32)
             .at[:, :ncls].set(bfc.reshape(1, ncls)))

    # VMEM budget: double/triple-buffered patches block + resident weights + slack,
    # capped at 48 MiB (safe within v7x's 64 MiB physical VMEM).
    patches_block_bytes = tB * t_hw * K * 2
    weights_bytes = (K * Cout_pad * 2 + Cout_pad * 4
                     + Cout_pad * ncls_pad * 4 + ncls_pad * 4)
    vmem_limit = int(min(48 << 20,
                         max(16 << 20,
                             6 * patches_block_bytes + 2 * weights_bytes + (2 << 20))))

    grid = (B_pad // tB, HW // t_hw)
    out_p = pl.pallas_call(
        _make_kernel(sub),
        out_shape=jax.ShapeDtypeStruct((B_pad, ncls_pad), jnp.float32),
        grid_spec=pltpu.PrefetchScalarGridSpec(
            num_scalar_prefetch=0,
            grid=grid,
            in_specs=[
                pl.BlockSpec((tB, t_hw, K), lambda b, hw: (b, hw, 0)),
                pl.BlockSpec((K, Cout_pad), lambda b, hw: (0, 0)),
                pl.BlockSpec((1, Cout_pad), lambda b, hw: (0, 0)),
                pl.BlockSpec((Cout_pad, ncls_pad), lambda b, hw: (0, 0)),
                pl.BlockSpec((1, ncls_pad), lambda b, hw: (0, 0)),
            ],
            out_specs=pl.BlockSpec((tB, ncls_pad), lambda b, hw: (b, 0)),
            scratch_shapes=[pltpu.VMEM((tB, Cout_pad), jnp.float32)],
        ),
        compiler_params=pltpu.CompilerParams(
            dimension_semantics=("parallel", "arbitrary"),
            vmem_limit_bytes=vmem_limit),
    )(patches, wconv_p, bconv_p, wfc_p, bfc_p)
    return out_p[:B, :ncls]


def reference_forward(x_nchw, wconv_hwio, bconv, wfc, bfc):
    """Pure-JAX f32 reference for the representative backbone."""
    x = jnp.transpose(x_nchw, (0, 2, 3, 1)).astype(jnp.float32)
    feat = jax.lax.conv_general_dilated(
        x, wconv_hwio, window_strides=(1, 1), padding="SAME",
        dimension_numbers=("NHWC", "HWIO", "NHWC"))
    feat = jnp.maximum(feat + bconv.reshape(1, 1, 1, -1), 0.0)
    pooled = jnp.mean(feat, axis=(1, 2))
    logits = pooled @ wfc + bfc.reshape(1, -1)
    return jax.nn.softmax(logits, axis=1)


if __name__ == "__main__":
    # Small shapes consistent with an image-classification forward pass.
    B, Cin, H, W = 2, 4, 16, 16
    Cout = 32            # backbone feature width
    NUM_CLASSES = 8

    key = jax.random.PRNGKey(0)
    kx, kw1, kb1, kw2, kb2 = jax.random.split(key, 5)

    x = jax.random.normal(kx, (B, Cin, H, W), dtype=jnp.float32)

    # Deterministic synthetic parameters (shapes only matter; no checkpoint load).
    wconv = 0.1 * jax.random.normal(kw1, (3, 3, Cin, Cout), dtype=jnp.float32)
    bconv = 0.1 * jax.random.normal(kb1, (1, Cout), dtype=jnp.float32)
    wfc = 0.1 * jax.random.normal(kw2, (Cout, NUM_CLASSES), dtype=jnp.float32)
    bfc = 0.1 * jax.random.normal(kb2, (1, NUM_CLASSES), dtype=jnp.float32)

    probs = classifier_forward(x, wconv, bconv, wfc, bfc)
    jax.block_until_ready(probs)

    ref = reference_forward(x, wconv, bconv, wfc, bfc)

    assert probs.shape == (B, NUM_CLASSES)
    # Rows sum to ~1 (loose tolerance: bf16 matmul operands + EUP approx reciprocal).
    assert jnp.allclose(jnp.sum(probs, axis=1), 1.0, atol=1e-2)
    assert jnp.allclose(probs, ref, atol=2e-2), float(jnp.max(jnp.abs(probs - ref)))
    print("KERNEL_OK")
</pallas_src>

<mosaic_0001>
module attributes {stable_mosaic.version = 11 : i64} {
  func.func @classifier_kernel(%arg0: i32, %arg1: i32, %arg2: memref<8x256x36xbf16, #tpu.memory_space<vmem>>, %arg3: memref<36x128xbf16, #tpu.memory_space<vmem>>, %arg4: memref<1x128xf32, #tpu.memory_space<vmem>>, %arg5: memref<128x128xf32, #tpu.memory_space<vmem>>, %arg6: memref<1x128xf32, #tpu.memory_space<vmem>>, %arg7: memref<8x128xf32, #tpu.memory_space<vmem>>, %arg8: memref<8x128xf32, #tpu.memory_space<vmem>>) attributes {dimension_semantics = [#tpu.dimension_semantics<parallel>, #tpu.dimension_semantics<arbitrary>], iteration_bounds = array<i64: 1, 1>, scalar_prefetch = 0 : i64, scratch_operands = 1 : i64, tpu.core_type = #tpu.core_type<tc>, window_params = [{transform_indices = @transform_0, window_bounds = array<i64: 8, 256, 36>}, {pipeline_mode = #tpu.pipeline_mode<synchronous>, transform_indices = @transform_1, window_bounds = array<i64: 36, 128>}, {pipeline_mode = #tpu.pipeline_mode<synchronous>, transform_indices = @transform_2, window_bounds = array<i64: 1, 128>}, {pipeline_mode = #tpu.pipeline_mode<synchronous>, transform_indices = @transform_3, window_bounds = array<i64: 128, 128>}, {pipeline_mode = #tpu.pipeline_mode<synchronous>, transform_indices = @transform_4, window_bounds = array<i64: 1, 128>}, {transform_indices = @transform_5, window_bounds = array<i64: 8, 128>}]} {
    %c0_i32 = arith.constant 0 : i32
    %0 = arith.cmpi eq, %arg1, %c0_i32 : i32
    %1 = arith.extui %0 : i1 to i32
    %c0_i32_0 = arith.constant 0 : i32
    %2 = arith.cmpi ne, %1, %c0_i32_0 : i32
    scf.if %2 {
      %cst_22 = arith.constant 0.000000e+00 : f32
      %35 = vector.broadcast %cst_22 : f32 to vector<8x128xf32>
      %c0_23 = arith.constant 0 : index
      %c0_24 = arith.constant 0 : index
      %36 = vector.load %arg8[%c0_23, %c0_24] : memref<8x128xf32, #tpu.memory_space<vmem>>, vector<8x128xf32>
      tpu.vector_store %arg8[%c0_23, %c0_24], %35 {strides = array<i32>} : memref<8x128xf32, #tpu.memory_space<vmem>>, vector<8x128xf32>,
    } else {
    }
    %c0 = arith.constant 0 : index
    %c0_1 = arith.constant 0 : index
    %3 = vector.load %arg3[%c0, %c0_1] : memref<36x128xbf16, #tpu.memory_space<vmem>>, vector<36x128xbf16>
    %c0_2 = arith.constant 0 : index
    %c0_3 = arith.constant 0 : index
    %4 = vector.load %arg4[%c0_2, %c0_3] : memref<1x128xf32, #tpu.memory_space<vmem>>, vector<1x128xf32>
    %5 = vector.shape_cast %4 : vector<1x128xf32> to vector<1x1x128xf32>
    %c0_4 = arith.constant 0 : index
    %c0_5 = arith.constant 0 : index
    %6 = vector.load %arg8[%c0_4, %c0_5] : memref<8x128xf32, #tpu.memory_space<vmem>>, vector<8x128xf32>
    %cst = arith.constant 0.000000e+00 : f32
    %7 = vector.broadcast %cst : f32 to vector<8x128xf32>
    %c0_i32_6 = arith.constant 0 : i32
    %c128_i32 = arith.constant 128 : i32
    %8 = arith.muli %c0_i32_6, %c128_i32 : i32
    %9 = tpu.assume_multiple %8, 128 : i32
    %c0_7 = arith.constant 0 : index
    %10 = arith.index_cast %9 : i32 to index
    %c0_8 = arith.constant 0 : index
    %11 = vector.load %arg2[%c0_7, %10, %c0_8] : memref<8x256x36xbf16, #tpu.memory_space<vmem>>, vector<8x128x36xbf16>
    %cst_9 = arith.constant dense<0.000000e+00> : vector<8x128x128xf32>
    %12 = tpu.matmul %11, %3, %cst_9 {dimension_numbers = #tpu.dot_dimension_numbers<[2], [0], [0, 1], [1], [0, 0, 0, 1, 1, 1], [], []>} : vector<8x128x36xbf16>, vector<36x128xbf16>, vector<8x128x128xf32> -> vector<8x128x128xf32>
    %13 = vector.broadcast %5 : vector<1x1x128xf32> to vector<8x128x128xf32>
    %14 = arith.addf %12, %13 : vector<8x128x128xf32>
    %cst_10 = arith.constant 0.000000e+00 : f32
    %15 = vector.broadcast %cst_10 : f32 to vector<8x128x128xf32>
    %16 = arith.maximumf %14, %15 : vector<8x128x128xf32>
    %cst_11 = arith.constant dense<0.000000e+00> : vector<8x128xf32>
    %17 = vector.multi_reduction <add>, %16, %cst_11 [1] : vector<8x128x128xf32> to vector<8x128xf32>
    %18 = arith.addf %7, %17 : vector<8x128xf32>
    %c1_i32 = arith.constant 1 : i32
    %c128_i32_12 = arith.constant 128 : i32
    %19 = arith.muli %c1_i32, %c128_i32_12 : i32
    %20 = tpu.assume_multiple %19, 128 : i32
    %c0_13 = arith.constant 0 : index
    %21 = arith.index_cast %20 : i32 to index
    %c0_14 = arith.constant 0 : index
    %22 = vector.load %arg2[%c0_13, %21, %c0_14] : memref<8x256x36xbf16, #tpu.memory_space<vmem>>, vector<8x128x36xbf16>
    %cst_15 = arith.constant dense<0.000000e+00> : vector<8x128x128xf32>
    %23 = tpu.matmul %22, %3, %cst_15 {dimension_numbers = #tpu.dot_dimension_numbers<[2], [0], [0, 1], [1], [0, 0, 0, 1, 1, 1], [], []>} : vector<8x128x36xbf16>, vector<36x128xbf16>, vector<8x128x128xf32> -> vector<8x128x128xf32>
    %24 = vector.broadcast %5 : vector<1x1x128xf32> to vector<8x128x128xf32>
    %25 = arith.addf %23, %24 : vector<8x128x128xf32>
    %cst_16 = arith.constant 0.000000e+00 : f32
    %26 = vector.broadcast %cst_16 : f32 to vector<8x128x128xf32>
    %27 = arith.maximumf %25, %26 : vector<8x128x128xf32>
    %cst_17 = arith.constant dense<0.000000e+00> : vector<8x128xf32>
    %28 = vector.multi_reduction <add>, %27, %cst_17 [1] : vector<8x128x128xf32> to vector<8x128xf32>
    %29 = arith.addf %18, %28 : vector<8x128xf32>
    %c2_i32 = arith.constant 2 : i32
    %30 = arith.addf %6, %29 : vector<8x128xf32>
    %c0_18 = arith.constant 0 : index
    %c0_19 = arith.constant 0 : index
    %31 = vector.load %arg8[%c0_18, %c0_19] : memref<8x128xf32, #tpu.memory_space<vmem>>, vector<8x128xf32>
    tpu.vector_store %arg8[%c0_18, %c0_19], %30 {strides = array<i32>} : memref<8x128xf32, #tpu.memory_space<vmem>>, vector<8x128xf32>,
    %c0_i32_20 = arith.constant 0 : i32
    %32 = arith.cmpi eq, %arg1, %c0_i32_20 : i32
    %33 = arith.extui %32 : i1 to i32
    %c0_i32_21 = arith.constant 0 : i32
    %34 = arith.cmpi ne, %33, %c0_i32_21 : i32
    scf.if %34 {
      %c0_22 = arith.constant 0 : index
      %c0_23 = arith.constant 0 : index
      %35 = vector.load %arg8[%c0_22, %c0_23] : memref<8x128xf32, #tpu.memory_space<vmem>>, vector<8x128xf32>
      %c0_24 = arith.constant 0 : index
      %c0_25 = arith.constant 0 : index
      %36 = vector.load %arg5[%c0_24, %c0_25] : memref<128x128xf32, #tpu.memory_space<vmem>>, vector<128x128xf32>
      %cst_26 = arith.constant dense<0.000000e+00> : vector<8x128xf32>
      %37 = tpu.matmul %35, %36, %cst_26 {dimension_numbers = #tpu.dot_dimension_numbers<[1], [0], [0], [1], [0, 0, 1, 1], [], []>} : vector<8x128xf32>, vector<128x128xf32>, vector<8x128xf32> -> vector<8x128xf32>
      %c0_27 = arith.constant 0 : index
      %c0_28 = arith.constant 0 : index
      %38 = vector.load %arg6[%c0_27, %c0_28] : memref<1x128xf32, #tpu.memory_space<vmem>>, vector<1x128xf32>
      %39 = vector.broadcast %38 : vector<1x128xf32> to vector<8x128xf32>
      %40 = arith.addf %37, %39 : vector<8x128xf32>
      %cst_29 = arith.constant dense<0xFF800000> : vector<8xf32>
      %41 = vector.multi_reduction <maximumf>, %40, %cst_29 [1] : vector<8x128xf32> to vector<8xf32>
      %42 = vector.shape_cast %41 : vector<8xf32> to vector<8x1xf32>
      %43 = vector.broadcast %42 : vector<8x1xf32> to vector<8x128xf32>
      %44 = arith.subf %40, %43 : vector<8x128xf32>
      %45 = math.exp %44 : vector<8x128xf32>
      %cst_30 = arith.constant dense<0.000000e+00> : vector<8xf32>
      %46 = vector.multi_reduction <add>, %45, %cst_30 [1] : vector<8x128xf32> to vector<8xf32>
      %47 = vector.shape_cast %46 : vector<8xf32> to vector<8x1xf32>
      %48 = tpu.reciprocal %47 {approx = true} : vector<8x1xf32> -> vector<8x1xf32>
      %49 = vector.broadcast %48 : vector<8x1xf32> to vector<8x128xf32>
      %50 = arith.mulf %45, %49 : vector<8x128xf32>
      %c0_31 = arith.constant 0 : index
      %c0_32 = arith.constant 0 : index
      %51 = vector.load %arg7[%c0_31, %c0_32] : memref<8x128xf32, #tpu.memory_space<vmem>>, vector<8x128xf32>
      tpu.vector_store %arg7[%c0_31, %c0_32], %50 {strides = array<i32>} : memref<8x128xf32, #tpu.memory_space<vmem>>, vector<8x128xf32>,
    } else {
    }
    return
  }
  func.func @transform_0(%arg0: i32, %arg1: i32) -> (i32, i32, i32) {
    %c0_i32 = arith.constant 0 : i32
    %c0_i32_0 = arith.constant 0 : i32
    return %arg0, %arg1, %c0_i32 : i32, i32, i32
  }
  func.func @transform_1(%arg0: i32, %arg1: i32) -> (i32, i32) {
    %c0_i32 = arith.constant 0 : i32
    %c0_i32_0 = arith.constant 0 : i32
    %c0_i32_1 = arith.constant 0 : i32
    return %c0_i32, %c0_i32_0 : i32, i32
  }
  func.func @transform_2(%arg0: i32, %arg1: i32) -> (i32, i32) {
    %c0_i32 = arith.constant 0 : i32
    %c0_i32_0 = arith.constant 0 : i32
    %c0_i32_1 = arith.constant 0 : i32
    return %c0_i32, %c0_i32_0 : i32, i32
  }
  func.func @transform_3(%arg0: i32, %arg1: i32) -> (i32, i32) {
    %c0_i32 = arith.constant 0 : i32
    %c0_i32_0 = arith.constant 0 : i32
    %c0_i32_1 = arith.constant 0 : i32
    return %c0_i32, %c0_i32_0 : i32, i32
  }
  func.func @transform_4(%arg0: i32, %arg1: i32) -> (i32, i32) {
    %c0_i32 = arith.constant 0 : i32
    %c0_i32_0 = arith.constant 0 : i32
    %c0_i32_1 = arith.constant 0 : i32
    return %c0_i32, %c0_i32_0 : i32, i32
  }
  func.func @transform_5(%arg0: i32, %arg1: i32) -> (i32, i32) {
    %c0_i32 = arith.constant 0 : i32
    %c0_i32_0 = arith.constant 0 : i32
    return %arg0, %c0_i32 : i32, i32
  }
}

</mosaic_0001>

<llo_original>
// kernel: tpu_custom_call.1
$region0: #{tpu_custom_call.1}
  #allocation0 [shape = 'u32[]', space=smem, size = 0x4, offset = 0x4, fixed_abs, tag = 'smem constant byte address 0x4 - core index']
  #allocation1 [shape = 'u32[144,128]{1,0:T(1,128)}', space=vmem, size = 0x12000, scoped, tag = 'internal scratch']
  #allocation2 [shape = 'f32[8,128]{1,0:T(8,128)}', space=vmem, size = 0x1000, scoped, tag = 'scratch operand']
  %s0 = inlined_call_operand.vmem [shape: bf16[8,256,36], index: 0, kind: input, shape index: {}]
  %s1 = inlined_call_operand.vmem [shape: bf16[36,128], index: 1, kind: input, shape index: {}]
  %s2 = inlined_call_operand.vmem [shape: f32[1,128], index: 2, kind: input, shape index: {}]
  %s3 = inlined_call_operand.vmem [shape: f32[128,128], index: 3, kind: input, shape index: {}]
  %s4 = inlined_call_operand.vmem [shape: f32[1,128], index: 4, kind: input, shape index: {}]
  %s5 = inlined_call_operand.hbm [shape: f32[8,128], index: 5, kind: output, shape index: {}]
  %s6 = sld [smem:[#allocation0]]
  $region38: #{tpu_custom_call.1} parent=0
    _
  %s8 = ssub.s32 1, %s6
  %s9 = scalar_select 0, %s8, %s6
  $region1: #{tpu_custom_call.1} parent=0
    #allocation3 [shape = 'u8[4096]{0}', space=vmem, size = 0x1000, scoped, tag = 'output window, operand 0, single buffered']
    #allocation4 [shape = 's32[1]{0}', space=sflag, size = 0x4, scoped, tag = 'scoped memory for tpu_custom_call.1']
    %10 = vsyncpa [#allocation4], 0
    // Predicated region
    $region2: #{tpu_custom_call.1} parent=1 // pred_check
      _
    $region3: #{tpu_custom_call.1} parent=1 // pred_check_branch
      %12 = sbr.rel (0) target = $region5
    $region4: #{tpu_custom_call.1} parent=1 // pred_region
      _
    $region5: #{tpu_custom_call.1} parent=1 // pred_fallthru
      _
    // Predicated region
    $region6: #{tpu_custom_call.1} parent=1 // pred_check
      _
    $region7: #{tpu_custom_call.1} parent=1 // pred_check_branch
      %14 = sbr.rel (0) target = $region9
    $region8: #{tpu_custom_call.1} parent=1 // pred_region
      _
    $region9: #{tpu_custom_call.1} parent=1 // pred_fallthru
      _
    // Predicated region
    $region10: #{tpu_custom_call.1} parent=1 // pred_check
      _
    $region11: #{tpu_custom_call.1} parent=1 // pred_check_branch
      %16 = sbr.rel (0) target = $region13
    $region12: #{tpu_custom_call.1} parent=1 // pred_region
      _
    $region13: #{tpu_custom_call.1} parent=1 // pred_fallthru
      _
    // Predicated region
    $region14: #{tpu_custom_call.1} parent=1 // pred_check
      _
    $region15: #{tpu_custom_call.1} parent=1 // pred_check_branch
      %18 = sbr.rel (0) target = $region17
    $region16: #{tpu_custom_call.1} parent=1 // pred_region
      _
    $region17: #{tpu_custom_call.1} parent=1 // pred_fallthru
      _
    // Predicated region
    $region18: #{tpu_custom_call.1} parent=1 // pred_check
      _
    $region19: #{tpu_custom_call.1} parent=1 // pred_check_branch
      %20 = sbr.rel (0) target = $region21
    $region20: #{tpu_custom_call.1} parent=1 // pred_region
      _
    $region21: #{tpu_custom_call.1} parent=1 // pred_fallthru
      _
    %p22 = scmp.eq.s32.totalorder 0, 0
    // Predicated region
    $region22: #{tpu_custom_call.1} parent=1 // pred_check
      %p23 = pneg %p22
    $region23: #{tpu_custom_call.1} parent=1 // pred_check_branch
      %25 = sbr.rel (%p23) target = $region25
    $region24: #{tpu_custom_call.1} parent=1 // pred_region
      %26 = vst [vmem:[#allocation2] sm:$0xff] 0.0
    $region25: #{tpu_custom_call.1} parent=1 // pred_fallthru
      _
    %v27 = vld [vmem:[%s1] sm:$0xf]
    %v28 = vld [vmem:[%s1 + $0x4] sm:$0xf]
    %v29 = vld [vmem:[%s1 + $0x8] sm:$0xf]
    %v30 = vld [vmem:[%s1 + $0xc] sm:$0xf]
    %v31 = vld [vmem:[%s1 + $0x10] sm:$0x3]
    %v32 = vld [vmem:[%s2] sm:$0x1]
    %v33 = vld [vmem:[#allocation2] sm:$0xff]
    %v34 = vld [vmem:[%s0] sm:$0xf]
    %v35 = vld [vmem:[%s0 + $0x4] sm:$0xf]
    %v36 = vld [vmem:[%s0 + $0x8] sm:$0xf]
    %v37 = vld [vmem:[%s0 + $0xc] sm:$0xf]
    %v38 = vld [vmem:[%s0 + $0x10] sm:$0xf]
    %v39 = vld [vmem:[%s0 + $0x14] sm:$0xf]
    %v40 = vld [vmem:[%s0 + $0x18] sm:$0xf]
    %v41 = vld [vmem:[%s0 + $0x1c] sm:$0xf]
    %v42 = vld [vmem:[%s0 + $0x20] sm:$0xf]
    %v43 = vld [vmem:[%s0 + $0x24] sm:$0xf]
    %v44 = vld [vmem:[%s0 + $0x28] sm:$0xf]
    %v45 = vld [vmem:[%s0 + $0x2c] sm:$0xf]
    %v46 = vld [vmem:[%s0 + $0x30] sm:$0xf]
    %v47 = vld [vmem:[%s0 + $0x34] sm:$0xf]
    %v48 = vld [vmem:[%s0 + $0x38] sm:$0xf]
    %v49 = vld [vmem:[%s0 + $0x3c] sm:$0xf]
    %v50 = vld [vmem:[%s0 + $0x80] sm:$0xf]
    %v51 = vld [vmem:[%s0 + $0x84] sm:$0xf]
    %v52 = vld [vmem:[%s0 + $0x88] sm:$0xf]
    %v53 = vld [vmem:[%s0 + $0x8c] sm:$0xf]
    %v54 = vld [vmem:[%s0 + $0x90] sm:$0xf]
    %v55 = vld [vmem:[%s0 + $0x94] sm:$0xf]
    %v56 = vld [vmem:[%s0 + $0x98] sm:$0xf]
    %v57 = vld [vmem:[%s0 + $0x9c] sm:$0xf]
    %v58 = vld [vmem:[%s0 + $0xa0] sm:$0xf]
    %v59 = vld [vmem:[%s0 + $0xa4] sm:$0xf]
    %v60 = vld [vmem:[%s0 + $0xa8] sm:$0xf]
    %v61 = vld [vmem:[%s0 + $0xac] sm:$0xf]
    %v62 = vld [vmem:[%s0 + $0xb0] sm:$0xf]
    %v63 = vld [vmem:[%s0 + $0xb4] sm:$0xf]
    %v64 = vld [vmem:[%s0 + $0xb8] sm:$0xf]
    %v65 = vld [vmem:[%s0 + $0xbc] sm:$0xf]
    %v66 = vld [vmem:[%s0 + $0x100] sm:$0xf]
    %v67 = vld [vmem:[%s0 + $0x104] sm:$0xf]
    %v68 = vld [vmem:[%s0 + $0x108] sm:$0xf]
    %v69 = vld [vmem:[%s0 + $0x10c] sm:$0xf]
    %v70 = vld [vmem:[%s0 + $0x110] sm:$0xf]
    %v71 = vld [vmem:[%s0 + $0x114] sm:$0xf]
    %v72 = vld [vmem:[%s0 + $0x118] sm:$0xf]
    %v73 = vld [vmem:[%s0 + $0x11c] sm:$0xf]
    %v74 = vld [vmem:[%s0 + $0x120] sm:$0xf]
    %v75 = vld [vmem:[%s0 + $0x124] sm:$0xf]
    %v76 = vld [vmem:[%s0 + $0x128] sm:$0xf]
    %v77 = vld [vmem:[%s0 + $0x12c] sm:$0xf]
    %v78 = vld [vmem:[%s0 + $0x130] sm:$0xf]
    %v79 = vld [vmem:[%s0 + $0x134] sm:$0xf]
    %v80 = vld [vmem:[%s0 + $0x138] sm:$0xf]
    %v81 = vld [vmem:[%s0 + $0x13c] sm:$0xf]
    %v82 = vld [vmem:[%s0 + $0x180] sm:$0xf]
    %v83 = vld [vmem:[%s0 + $0x184] sm:$0xf]
    %v84 = vld [vmem:[%s0 + $0x188] sm:$0xf]
    %v85 = vld [vmem:[%s0 + $0x18c] sm:$0xf]
    %v86 = vld [vmem:[%s0 + $0x190] sm:$0xf]
    %v87 = vld [vmem:[%s0 + $0x194] sm:$0xf]
    %v88 = vld [vmem:[%s0 + $0x198] sm:$0xf]
    %v89 = vld [vmem:[%s0 + $0x19c] sm:$0xf]
    %v90 = vld [vmem:[%s0 + $0x1a0] sm:$0xf]
    %v91 = vld [vmem:[%s0 + $0x1a4] sm:$0xf]
    %v92 = vld [vmem:[%s0 + $0x1a8] sm:$0xf]
    %v93 = vld [vmem:[%s0 + $0x1ac] sm:$0xf]
    %v94 = vld [vmem:[%s0 + $0x1b0] sm:$0xf]
    %v95 = vld [vmem:[%s0 + $0x1b4] sm:$0xf]
    %v96 = vld [vmem:[%s0 + $0x1b8] sm:$0xf]
    %v97 = vld [vmem:[%s0 + $0x1bc] sm:$0xf]
    %v98 = vld [vmem:[%s0 + $0x200] sm:$0xf]
    %v99 = vld [vmem:[%s0 + $0x204] sm:$0xf]
    %v100 = vld [vmem:[%s0 + $0x208] sm:$0xf]
    %v101 = vld [vmem:[%s0 + $0x20c] sm:$0xf]
    %v102 = vld [vmem:[%s0 + $0x210] sm:$0xf]
    %v103 = vld [vmem:[%s0 + $0x214] sm:$0xf]
    %v104 = vld [vmem:[%s0 + $0x218] sm:$0xf]
    %v105 = vld [vmem:[%s0 + $0x21c] sm:$0xf]
    %v106 = vld [vmem:[%s0 + $0x220] sm:$0xf]
    %v107 = vld [vmem:[%s0 + $0x224] sm:$0xf]
    %v108 = vld [vmem:[%s0 + $0x228] sm:$0xf]
    %v109 = vld [vmem:[%s0 + $0x22c] sm:$0xf]
    %v110 = vld [vmem:[%s0 + $0x230] sm:$0xf]
    %v111 = vld [vmem:[%s0 + $0x234] sm:$0xf]
    %v112 = vld [vmem:[%s0 + $0x238] sm:$0xf]
    %v113 = vld [vmem:[%s0 + $0x23c] sm:$0xf]
    %v114 = vld [vmem:[%s0 + $0x280] sm:$0xf]
    %v115 = vld [vmem:[%s0 + $0x284] sm:$0xf]
    %v116 = vld [vmem:[%s0 + $0x288] sm:$0xf]
    %v117 = vld [vmem:[%s0 + $0x28c] sm:$0xf]
    %v118 = vld [vmem:[%s0 + $0x290] sm:$0xf]
    %v119 = vld [vmem:[%s0 + $0x294] sm:$0xf]
    %v120 = vld [vmem:[%s0 + $0x298] sm:$0xf]
    %v121 = vld [vmem:[%s0 + $0x29c] sm:$0xf]
    %v122 = vld [vmem:[%s0 + $0x2a0] sm:$0xf]
    %v123 = vld [vmem:[%s0 + $0x2a4] sm:$0xf]
    %v124 = vld [vmem:[%s0 + $0x2a8] sm:$0xf]
    %v125 = vld [vmem:[%s0 + $0x2ac] sm:$0xf]
    %v126 = vld [vmem:[%s0 + $0x2b0] sm:$0xf]
    %v127 = vld [vmem:[%s0 + $0x2b4] sm:$0xf]
    %v128 = vld [vmem:[%s0 + $0x2b8] sm:$0xf]
    %v129 = vld [vmem:[%s0 + $0x2bc] sm:$0xf]
    %v130 = vld [vmem:[%s0 + $0x300] sm:$0xf]
    %v131 = vld [vmem:[%s0 + $0x304] sm:$0xf]
    %v132 = vld [vmem:[%s0 + $0x308] sm:$0xf]
    %v133 = vld [vmem:[%s0 + $0x30c] sm:$0xf]
    %v134 = vld [vmem:[%s0 + $0x310] sm:$0xf]
    %v135 = vld [vmem:[%s0 + $0x314] sm:$0xf]
    %v136 = vld [vmem:[%s0 + $0x318] sm:$0xf]
    %v137 = vld [vmem:[%s0 + $0x31c] sm:$0xf]
    %v138 = vld [vmem:[%s0 + $0x320] sm:$0xf]
    %v139 = vld [vmem:[%s0 + $0x324] sm:$0xf]
    %v140 = vld [vmem:[%s0 + $0x328] sm:$0xf]
    %v141 = vld [vmem:[%s0 + $0x32c] sm:$0xf]
    %v142 = vld [vmem:[%s0 + $0x330] sm:$0xf]
    %v143 = vld [vmem:[%s0 + $0x334] sm:$0xf]
    %v144 = vld [vmem:[%s0 + $0x338] sm:$0xf]
    %v145 = vld [vmem:[%s0 + $0x33c] sm:$0xf]
    %v146 = vld [vmem:[%s0 + $0x380] sm:$0xf]
    %v147 = vld [vmem:[%s0 + $0x384] sm:$0xf]
    %v148 = vld [vmem:[%s0 + $0x388] sm:$0xf]
    %v149 = vld [vmem:[%s0 + $0x38c] sm:$0xf]
    %v150 = vld [vmem:[%s0 + $0x390] sm:$0xf]
    %v151 = vld [vmem:[%s0 + $0x394] sm:$0xf]
    %v152 = vld [vmem:[%s0 + $0x398] sm:$0xf]
    %v153 = vld [vmem:[%s0 + $0x39c] sm:$0xf]
    %v154 = vld [vmem:[%s0 + $0x3a0] sm:$0xf]
    %v155 = vld [vmem:[%s0 + $0x3a4] sm:$0xf]
    %v156 = vld [vmem:[%s0 + $0x3a8] sm:$0xf]
    %v157 = vld [vmem:[%s0 + $0x3ac] sm:$0xf]
    %v158 = vld [vmem:[%s0 + $0x3b0] sm:$0xf]
    %v159 = vld [vmem:[%s0 + $0x3b4] sm:$0xf]
    %v160 = vld [vmem:[%s0 + $0x3b8] sm:$0xf]
    %v161 = vld [vmem:[%s0 + $0x3bc] sm:$0xf]
    %v163 = vlaneseq
    %v164 = vshrl.u32 %v163, 7
    %v165 = vsub.s32 0, %v164
    %v166 = vrot.slane %v32, %v165
    %v296 = vunpack.c.l.b16 %v34
    %v297 = vunpack.c.l.b16 %v35
    %v298 = vunpack.c.l.b16 %v36
    %v299 = vunpack.c.l.b16 %v37
    %v300 = vunpack.c.l.b16 %v38
    %v301 = vunpack.c.l.b16 %v39
    %v302 = vunpack.c.l.b16 %v40
    %v303 = vunpack.c.l.b16 %v41
    %v304 = vunpack.c.l.b16 %v42
    %v305 = vunpack.c.l.b16 %v43
    %v306 = vunpack.c.l.b16 %v44
    %v307 = vunpack.c.l.b16 %v45
    %v308 = vunpack.c.l.b16 %v46
    %v309 = vunpack.c.l.b16 %v47
    %v310 = vunpack.c.l.b16 %v48
    %v311 = vunpack.c.l.b16 %v49
    %v312 = vunpack.c.l.b16 %v50
    %v313 = vunpack.c.l.b16 %v51
    %v314 = vunpack.c.l.b16 %v52
    %v315 = vunpack.c.l.b16 %v53
    %v316 = vunpack.c.l.b16 %v54
    %v317 = vunpack.c.l.b16 %v55
    %v318 = vunpack.c.l.b16 %v56
    %v319 = vunpack.c.l.b16 %v57
    %v320 = vunpack.c.l.b16 %v58
    %v321 = vunpack.c.l.b16 %v59
    %v322 = vunpack.c.l.b16 %v60
    %v323 = vunpack.c.l.b16 %v61
    %v324 = vunpack.c.l.b16 %v62
    %v325 = vunpack.c.l.b16 %v63
    %v326 = vunpack.c.l.b16 %v64
    %v327 = vunpack.c.l.b16 %v65
    %v328 = vunpack.c.l.b16 %v66
    %v329 = vunpack.c.l.b16 %v67
    %v330 = vunpack.c.l.b16 %v68
    %v331 = vunpack.c.l.b16 %v69
    %v332 = vunpack.c.l.b16 %v70
    %v333 = vunpack.c.l.b16 %v71
    %v334 = vunpack.c.l.b16 %v72
    %v335 = vunpack.c.l.b16 %v73
    %v336 = vunpack.c.l.b16 %v74
    %v337 = vunpack.c.l.b16 %v75
    %v338 = vunpack.c.l.b16 %v76
    %v339 = vunpack.c.l.b16 %v77
    %v340 = vunpack.c.l.b16 %v78
    %v341 = vunpack.c.l.b16 %v79
    %v342 = vunpack.c.l.b16 %v80
    %v343 = vunpack.c.l.b16 %v81
    %v344 = vunpack.c.l.b16 %v82
    %v345 = vunpack.c.l.b16 %v83
    %v346 = vunpack.c.l.b16 %v84
    %v347 = vunpack.c.l.b16 %v85
    %v348 = vunpack.c.l.b16 %v86
    %v349 = vunpack.c.l.b16 %v87
    %v350 = vunpack.c.l.b16 %v88
    %v351 = vunpack.c.l.b16 %v89
    %v352 = vunpack.c.l.b16 %v90
    %v353 = vunpack.c.l.b16 %v91
    %v354 = vunpack.c.l.b16 %v92
    %v355 = vunpack.c.l.b16 %v93
    %v356 = vunpack.c.l.b16 %v94
    %v357 = vunpack.c.l.b16 %v95
    %v358 = vunpack.c.l.b16 %v96
    %v359 = vunpack.c.l.b16 %v97
    %v360 = vunpack.c.l.b16 %v98
    %v361 = vunpack.c.l.b16 %v99
    %v362 = vunpack.c.l.b16 %v100
    %v363 = vunpack.c.l.b16 %v101
    %v364 = vunpack.c.l.b16 %v102
    %v365 = vunpack.c.l.b16 %v103
    %v366 = vunpack.c.l.b16 %v104
    %v367 = vunpack.c.l.b16 %v105
    %v368 = vunpack.c.l.b16 %v106
    %v369 = vunpack.c.l.b16 %v107
    %v370 = vunpack.c.l.b16 %v108
    %v371 = vunpack.c.l.b16 %v109
    %v372 = vunpack.c.l.b16 %v110
    %v373 = vunpack.c.l.b16 %v111
    %v374 = vunpack.c.l.b16 %v112
    %v375 = vunpack.c.l.b16 %v113
    %v376 = vunpack.c.l.b16 %v114
    %v377 = vunpack.c.l.b16 %v115
    %v378 = vunpack.c.l.b16 %v116
    %v379 = vunpack.c.l.b16 %v117
    %v380 = vunpack.c.l.b16 %v118
    %v381 = vunpack.c.l.b16 %v119
    %v382 = vunpack.c.l.b16 %v120
    %v383 = vunpack.c.l.b16 %v121
    %v384 = vunpack.c.l.b16 %v122
    %v385 = vunpack.c.l.b16 %v123
    %v386 = vunpack.c.l.b16 %v124
    %v387 = vunpack.c.l.b16 %v125
    %v388 = vunpack.c.l.b16 %v126
    %v389 = vunpack.c.l.b16 %v127
    %v390 = vunpack.c.l.b16 %v128
    %v391 = vunpack.c.l.b16 %v129
    %v392 = vunpack.c.l.b16 %v130
    %v393 = vunpack.c.l.b16 %v131
    %v394 = vunpack.c.l.b16 %v132
    %v395 = vunpack.c.l.b16 %v133
    %v396 = vunpack.c.l.b16 %v134
    %v397 = vunpack.c.l.b16 %v135
    %v398 = vunpack.c.l.b16 %v136
    %v399 = vunpack.c.l.b16 %v137
    %v400 = vunpack.c.l.b16 %v138
    %v401 = vunpack.c.l.b16 %v139
    %v402 = vunpack.c.l.b16 %v140
    %v403 = vunpack.c.l.b16 %v141
    %v404 = vunpack.c.l.b16 %v142
    %v405 = vunpack.c.l.b16 %v143
    %v406 = vunpack.c.l.b16 %v144
    %v407 = vunpack.c.l.b16 %v145
    %v408 = vunpack.c.l.b16 %v146
    %v409 = vunpack.c.l.b16 %v147
    %v410 = vunpack.c.l.b16 %v148
    %v411 = vunpack.c.l.b16 %v149
    %v412 = vunpack.c.l.b16 %v150
    %v413 = vunpack.c.l.b16 %v151
    %v414 = vunpack.c.l.b16 %v152
    %v415 = vunpack.c.l.b16 %v153
    %v416 = vunpack.c.l.b16 %v154
    %v417 = vunpack.c.l.b16 %v155
    %v418 = vunpack.c.l.b16 %v156
    %v419 = vunpack.c.l.b16 %v157
    %v420 = vunpack.c.l.b16 %v158
    %v421 = vunpack.c.l.b16 %v159
    %v422 = vunpack.c.l.b16 %v160
    %v423 = vunpack.c.l.b16 %v161
    %v424 = vpack.c.b16 %v297, %v296
    %v425 = vpack.c.b16 %v299, %v298
    %v426 = vpack.c.b16 %v301, %v300
    %v427 = vpack.c.b16 %v303, %v302
    %v428 = vpack.c.b16 %v305, %v304
    %v429 = vpack.c.b16 %v307, %v306
    %v430 = vpack.c.b16 %v309, %v308
    %v431 = vpack.c.b16 %v311, %v310
    %v432 = vpack.c.b16 %v313, %v312
    %v433 = vpack.c.b16 %v315, %v314
    %v434 = vpack.c.b16 %v317, %v316
    %v435 = vpack.c.b16 %v319, %v318
    %v436 = vpack.c.b16 %v321, %v320
    %v437 = vpack.c.b16 %v323, %v322
    %v438 = vpack.c.b16 %v325, %v324
    %v439 = vpack.c.b16 %v327, %v326
    %v440 = vpack.c.b16 %v329, %v328
    %v441 = vpack.c.b16 %v331, %v330
    %v442 = vpack.c.b16 %v333, %v332
    %v443 = vpack.c.b16 %v335, %v334
    %v444 = vpack.c.b16 %v337, %v336
    %v445 = vpack.c.b16 %v339, %v338
    %v446 = vpack.c.b16 %v341, %v340
    %v447 = vpack.c.b16 %v343, %v342
    %v448 = vpack.c.b16 %v345, %v344
    %v449 = vpack.c.b16 %v347, %v346
    %v450 = vpack.c.b16 %v349, %v348
    %v451 = vpack.c.b16 %v351, %v350
    %v452 = vpack.c.b16 %v353, %v352
    %v453 = vpack.c.b16 %v355, %v354
    %v454 = vpack.c.b16 %v357, %v356
    %v455 = vpack.c.b16 %v359, %v358
    %v456 = vpack.c.b16 %v361, %v360
    %v457 = vpack.c.b16 %v363, %v362
    %v458 = vpack.c.b16 %v365, %v364
    %v459 = vpack.c.b16 %v367, %v366
    %v460 = vpack.c.b16 %v369, %v368
    %v461 = vpack.c.b16 %v371, %v370
    %v462 = vpack.c.b16 %v373, %v372
    %v463 = vpack.c.b16 %v375, %v374
    %v464 = vpack.c.b16 %v377, %v376
    %v465 = vpack.c.b16 %v379, %v378
    %v466 = vpack.c.b16 %v381, %v380
    %v467 = vpack.c.b16 %v383, %v382
    %v468 = vpack.c.b16 %v385, %v384
    %v469 = vpack.c.b16 %v387, %v386
    %v470 = vpack.c.b16 %v389, %v388
    %v471 = vpack.c.b16 %v391, %v390
    %v472 = vpack.c.b16 %v393, %v392
    %v473 = vpack.c.b16 %v395, %v394
    %v474 = vpack.c.b16 %v397, %v396
    %v475 = vpack.c.b16 %v399, %v398
    %v476 = vpack.c.b16 %v401, %v400
    %v477 = vpack.c.b16 %v403, %v402
    %v478 = vpack.c.b16 %v405, %v404
    %v479 = vpack.c.b16 %v407, %v406
    %v480 = vpack.c.b16 %v409, %v408
    %v481 = vpack.c.b16 %v411, %v410
    %v482 = vpack.c.b16 %v413, %v412
    %v483 = vpack.c.b16 %v415, %v414
    %v484 = vpack.c.b16 %v417, %v416
    %v485 = vpack.c.b16 %v419, %v418
    %v486 = vpack.c.b16 %v421, %v420
    %v487 = vpack.c.b16 %v423, %v422
    %v493 = vunpack.c.l.b16 %v27
    %v494 = vunpack.c.l.b16 %v28
    %v495 = vunpack.c.l.b16 %v29
    %v496 = vunpack.c.l.b16 %v30
    %v497 = vunpack.c.l.b16 %v31
    %v498 = vpack.c.b16 %v494, %v493
    %v499 = vpack.c.b16 %v496, %v495
    %v500 = vpack.c.b16 %v497, %v497
    %vm503 = vcmask 293888
    %v505 = vsel %vm503, %v424, 0
    %v508 = vsel %vm503, %v425, 0
    %v511 = vsel %vm503, %v426, 0
    %v514 = vsel %vm503, %v427, 0
    %v517 = vsel %vm503, %v428, 0
    %v520 = vsel %vm503, %v429, 0
    %v523 = vsel %vm503, %v430, 0
    %v526 = vsel %vm503, %v431, 0
    %v529 = vsel %vm503, %v432, 0
    %v532 = vsel %vm503, %v433, 0
    %v535 = vsel %vm503, %v434, 0
    %v538 = vsel %vm503, %v435, 0
    %v541 = vsel %vm503, %v436, 0
    %v544 = vsel %vm503, %v437, 0
    %v547 = vsel %vm503, %v438, 0
    %v550 = vsel %vm503, %v439, 0
    %v553 = vsel %vm503, %v440, 0
    %v556 = vsel %vm503, %v441, 0
    %v559 = vsel %vm503, %v442, 0
    %v562 = vsel %vm503, %v443, 0
    %v565 = vsel %vm503, %v444, 0
    %v568 = vsel %vm503, %v445, 0
    %v571 = vsel %vm503, %v446, 0
    %v574 = vsel %vm503, %v447, 0
    %v577 = vsel %vm503, %v448, 0
    %v580 = vsel %vm503, %v449, 0
    %v583 = vsel %vm503, %v450, 0
    %v586 = vsel %vm503, %v451, 0
    %v589 = vsel %vm503, %v452, 0
    %v592 = vsel %vm503, %v453, 0
    %v595 = vsel %vm503, %v454, 0
    %v598 = vsel %vm503, %v455, 0
    %v601 = vsel %vm503, %v456, 0
    %v604 = vsel %vm503, %v457, 0
    %v607 = vsel %vm503, %v458, 0
    %v610 = vsel %vm503, %v459, 0
    %v613 = vsel %vm503, %v460, 0
    %v616 = vsel %vm503, %v461, 0
    %v619 = vsel %vm503, %v462, 0
    %v622 = vsel %vm503, %v463, 0
    %v625 = vsel %vm503, %v464, 0
    %v628 = vsel %vm503, %v465, 0
    %v631 = vsel %vm503, %v466, 0
    %v634 = vsel %vm503, %v467, 0
    %v637 = vsel %vm503, %v468, 0
    %v640 = vsel %vm503, %v469, 0
    %v643 = vsel %vm503, %v470, 0
    %v646 = vsel %vm503, %v471, 0
    %v649 = vsel %vm503, %v472, 0
    %v652 = vsel %vm503, %v473, 0
    %v655 = vsel %vm503, %v474, 0
    %v658 = vsel %vm503, %v475, 0
    %v661 = vsel %vm503, %v476, 0
    %v664 = vsel %vm503, %v477, 0
    %v667 = vsel %vm503, %v478, 0
    %v670 = vsel %vm503, %v479, 0
    %v673 = vsel %vm503, %v480, 0
    %v676 = vsel %vm503, %v481, 0
    %v679 = vsel %vm503, %v482, 0
    %v682 = vsel %vm503, %v483, 0
    %v685 = vsel %vm503, %v484, 0
    %v688 = vsel %vm503, %v485, 0
    %v691 = vsel %vm503, %v486, 0
    %v694 = vsel %vm503, %v487, 0
    %vm696 = vcmask 1041408
    %v698 = vsel %vm696, %v500, 0
    %700 = vmatprep.subr.bf16.mxu0 0
    %701 = vmatpush1.bf16.msra.mxu0 %v498
    %702 = vmatprep.subr.bf16.mxu0 0
    %703 = vmatpush1.bf16.msra.mxu0 %v499
    %704 = vmatprep.subr.bf16.mxu0 0
    %705 = vmatpush1.bf16.msra.mxu0 %v698
    %706 = vmatprep.subr.bf16.mxu0 0
    %707 = vmatpush1.bf16.msra.mxu0 0
    %708 = vmatprep.subr.bf16.mxu0 0
    %709 = vmatpush1.bf16.msra.mxu0 0
    %710 = vmatprep.subr.bf16.mxu0 0
    %711 = vmatpush1.bf16.msra.mxu0 0
    %712 = vmatprep.subr.bf16.mxu0 0
    %713 = vmatpush1.bf16.msra.mxu0 0
    %714 = vmatprep.subr.bf16.mxu0 0
    %715 = vmatpush1.bf16.msra.mxu0 0
    %716 = vmatprep.subr.bf16.mxu0 0
    %717 = vmatpush1.bf16.msra.mxu0 0
    %718 = vmatprep.subr.bf16.mxu0 0
    %719 = vmatpush1.bf16.msra.mxu0 0
    %720 = vmatprep.subr.bf16.mxu0 0
    %721 = vmatpush1.bf16.msra.mxu0 0
    %722 = vmatprep.subr.bf16.mxu0 0
    %723 = vmatpush1.bf16.msra.mxu0 0
    %724 = vmatprep.subr.bf16.mxu0 0
    %725 = vmatpush1.bf16.msra.mxu0 0
    %726 = vmatprep.subr.bf16.mxu0 0
    %727 = vmatpush1.bf16.msra.mxu0 0
    %728 = vmatprep.subr.bf16.mxu0 0
    %729 = vmatpush1.bf16.msra.mxu0 0
    %730 = vmatprep.subr.bf16.mxu0 0
    %731 = vmatpush1.bf16.msra.mxu0 0
    %732 = vmatprep.mubr.bf16.mxu0 0
    %733 = vmatmul.mubr.bf16.gmra.mrb[0].mxu0 %v505
    %v734 = vpop.f32.mrb[0].mxu0
    %v735 = vadd.f32 %v166, %v734
    %v736 = vpop.f32.mrb[0].mxu0
    %v737 = vpop.f32.mrb[0].mxu0
    %v738 = vadd.f32 %v166, %v737
    %v739 = vpop.f32.mrb[0].mxu0
    %740 = vmatprep.mubr.bf16.mxu0 0
    %741 = vmatmul.mubr.bf16.gmra.mrb[0].mxu0 %v508
    %v742 = vpop.f32.mrb[0].mxu0
    %v743 = vadd.f32 %v166, %v742
    %v744 = vpop.f32.mrb[0].mxu0
    %v745 = vpop.f32.mrb[0].mxu0
    %v746 = vadd.f32 %v166, %v745
    %v747 = vpop.f32.mrb[0].mxu0
    %748 = vmatprep.mubr.bf16.mxu0 0
    %749 = vmatmul.mubr.bf16.gmra.mrb[0].mxu0 %v511
    %v750 = vpop.f32.mrb[0].mxu0
    %v751 = vadd.f32 %v166, %v750
    %v752 = vpop.f32.mrb[0].mxu0
    %v753 = vpop.f32.mrb[0].mxu0
    %v754 = vadd.f32 %v166, %v753
    %v755 = vpop.f32.mrb[0].mxu0
    %756 = vmatprep.mubr.bf16.mxu0 0
    %757 = vmatmul.mubr.bf16.gmra.mrb[0].mxu0 %v514
    %v758 = vpop.f32.mrb[0].mxu0
    %v759 = vadd.f32 %v166, %v758
    %v760 = vpop.f32.mrb[0].mxu0
    %v761 = vpop.f32.mrb[0].mxu0
    %v762 = vadd.f32 %v166, %v761
    %v763 = vpop.f32.mrb[0].mxu0
    %764 = vmatprep.mubr.bf16.mxu0 0
    %765 = vmatmul.mubr.bf16.gmra.mrb[0].mxu0 %v517
    %v766 = vpop.f32.mrb[0].mxu0
    %v767 = vadd.f32 %v166, %v766
    %v768 = vpop.f32.mrb[0].mxu0
    %v769 = vpop.f32.mrb[0].mxu0
    %v770 = vadd.f32 %v166, %v769
    %v771 = vpop.f32.mrb[0].mxu0
    %772 = vmatprep.mubr.bf16.mxu0 0
    %773 = vmatmul.mubr.bf16.gmra.mrb[0].mxu0 %v520
    %v774 = vpop.f32.mrb[0].mxu0
    %v775 = vadd.f32 %v166, %v774
    %v776 = vpop.f32.mrb[0].mxu0
    %v777 = vpop.f32.mrb[0].mxu0
    %v778 = vadd.f32 %v166, %v777
    %v779 = vpop.f32.mrb[0].mxu0
    %780 = vmatprep.mubr.bf16.mxu0 0
    %781 = vmatmul.mubr.bf16.gmra.mrb[0].mxu0 %v523
    %v782 = vpop.f32.mrb[0].mxu0
    %v783 = vadd.f32 %v166, %v782
    %v784 = vpop.f32.mrb[0].mxu0
    %v785 = vpop.f32.mrb[0].mxu0
    %v786 = vadd.f32 %v166, %v785
    %v787 = vpop.f32.mrb[0].mxu0
    %788 = vmatprep.mubr.bf16.mxu0 0
    %789 = vmatmul.mubr.bf16.gmra.mrb[0].mxu0 %v526
    %v790 = vpop.f32.mrb[0].mxu0
    %v791 = vadd.f32 %v166, %v790
    %v792 = vpop.f32.mrb[0].mxu0
    %v793 = vpop.f32.mrb[0].mxu0
    %v794 = vadd.f32 %v166, %v793
    %v795 = vpop.f32.mrb[0].mxu0
    %796 = vmatprep.mubr.bf16.mxu0 0
    %797 = vmatmul.mubr.bf16.gmra.mrb[0].mxu0 %v529
    %v798 = vpop.f32.mrb[0].mxu0
    %v799 = vadd.f32 %v166, %v798
    %v800 = vpop.f32.mrb[0].mxu0
    %v801 = vpop.f32.mrb[0].mxu0
    %v802 = vadd.f32 %v166, %v801
    %v803 = vpop.f32.mrb[0].mxu0
    %804 = vmatprep.mubr.bf16.mxu0 0
    %805 = vmatmul.mubr.bf16.gmra.mrb[0].mxu0 %v532
    %v806 = vpop.f32.mrb[0].mxu0
    %v807 = vadd.f32 %v166, %v806
    %v808 = vpop.f32.mrb[0].mxu0
    %v809 = vpop.f32.mrb[0].mxu0
    %v810 = vadd.f32 %v166, %v809
    %v811 = vpop.f32.mrb[0].mxu0
    %812 = vmatprep.mubr.bf16.mxu0 0
    %813 = vmatmul.mubr.bf16.gmra.mrb[0].mxu0 %v535
    %v814 = vpop.f32.mrb[0].mxu0
    %v815 = vadd.f32 %v166, %v814
    %v816 = vpop.f32.mrb[0].mxu0
    %v817 = vpop.f32.mrb[0].mxu0
    %v818 = vadd.f32 %v166, %v817
    %v819 = vpop.f32.mrb[0].mxu0
    %820 = vmatprep.mubr.bf16.mxu0 0
    %821 = vmatmul.mubr.bf16.gmra.mrb[0].mxu0 %v538
    %v822 = vpop.f32.mrb[0].mxu0
    %v823 = vadd.f32 %v166, %v822
    %v824 = vpop.f32.mrb[0].mxu0
    %v825 = vpop.f32.mrb[0].mxu0
    %v826 = vadd.f32 %v166, %v825
    %v827 = vpop.f32.mrb[0].mxu0
    %828 = vmatprep.mubr.bf16.mxu0 0
    %829 = vmatmul.mubr.bf16.gmra.mrb[0].mxu0 %v541
    %v830 = vpop.f32.mrb[0].mxu0
    %v831 = vadd.f32 %v166, %v830
    %v832 = vpop.f32.mrb[0].mxu0
    %v833 = vpop.f32.mrb[0].mxu0
    %v834 = vadd.f32 %v166, %v833
    %v835 = vpop.f32.mrb[0].mxu0
    %836 = vmatprep.mubr.bf16.mxu0 0
    %837 = vmatmul.mubr.bf16.gmra.mrb[0].mxu0 %v544
    %v838 = vpop.f32.mrb[0].mxu0
    %v839 = vadd.f32 %v166, %v838
    %v840 = vpop.f32.mrb[0].mxu0
    %v841 = vpop.f32.mrb[0].mxu0
    %v842 = vadd.f32 %v166, %v841
    %v843 = vpop.f32.mrb[0].mxu0
    %844 = vmatprep.mubr.bf16.mxu0 0
    %845 = vmatmul.mubr.bf16.gmra.mrb[0].mxu0 %v547
    %v846 = vpop.f32.mrb[0].mxu0
    %v847 = vadd.f32 %v166, %v846
    %v848 = vpop.f32.mrb[0].mxu0
    %v849 = vpop.f32.mrb[0].mxu0
    %v850 = vadd.f32 %v166, %v849
    %v851 = vpop.f32.mrb[0].mxu0
    %852 = vmatprep.mubr.bf16.mxu0 0
    %853 = vmatmul.mubr.bf16.gmra.mrb[0].mxu0 %v550
    %v854 = vpop.f32.mrb[0].mxu0
    %v855 = vadd.f32 %v166, %v854
    %v856 = vpop.f32.mrb[0].mxu0
    %v857 = vpop.f32.mrb[0].mxu0
    %v858 = vadd.f32 %v166, %v857
    %v859 = vpop.f32.mrb[0].mxu0
    %860 = vmatprep.mubr.bf16.mxu0 0
    %861 = vmatmul.mubr.bf16.gmra.mrb[0].mxu0 %v553
    %v862 = vpop.f32.mrb[0].mxu0
    %v863 = vadd.f32 %v166, %v862
    %v864 = vpop.f32.mrb[0].mxu0
    %v865 = vpop.f32.mrb[0].mxu0
    %v866 = vadd.f32 %v166, %v865
    %v867 = vpop.f32.mrb[0].mxu0
    %868 = vmatprep.mubr.bf16.mxu0 0
    %869 = vmatmul.mubr.bf16.gmra.mrb[0].mxu0 %v556
    %v870 = vpop.f32.mrb[0].mxu0
    %v871 = vadd.f32 %v166, %v870
    %v872 = vpop.f32.mrb[0].mxu0
    %v873 = vpop.f32.mrb[0].mxu0
    %v874 = vadd.f32 %v166, %v873
    %v875 = vpop.f32.mrb[0].mxu0
    %876 = vmatprep.mubr.bf16.mxu0 0
    %877 = vmatmul.mubr.bf16.gmra.mrb[0].mxu0 %v559
    %v878 = vpop.f32.mrb[0].mxu0
    %v879 = vadd.f32 %v166, %v878
    %v880 = vpop.f32.mrb[0].mxu0
    %v881 = vpop.f32.mrb[0].mxu0
    %v882 = vadd.f32 %v166, %v881
    %v883 = vpop.f32.mrb[0].mxu0
    %884 = vmatprep.mubr.bf16.mxu0 0
    %885 = vmatmul.mubr.bf16.gmra.mrb[0].mxu0 %v562
    %v886 = vpop.f32.mrb[0].mxu0
    %v887 = vadd.f32 %v166, %v886
    %v888 = vpop.f32.mrb[0].mxu0
    %v889 = vpop.f32.mrb[0].mxu0
    %v890 = vadd.f32 %v166, %v889
    %v891 = vpop.f32.mrb[0].mxu0
    %892 = vmatprep.mubr.bf16.mxu0 0
    %893 = vmatmul.mubr.bf16.gmra.mrb[0].mxu0 %v565
    %v894 = vpop.f32.mrb[0].mxu0
    %v895 = vadd.f32 %v166, %v894
    %v896 = vpop.f32.mrb[0].mxu0
    %v897 = vpop.f32.mrb[0].mxu0
    %v898 = vadd.f32 %v166, %v897
    %v899 = vpop.f32.mrb[0].mxu0
    %900 = vmatprep.mubr.bf16.mxu0 0
    %901 = vmatmul.mubr.bf16.gmra.mrb[0].mxu0 %v568
    %v902 = vpop.f32.mrb[0].mxu0
    %v903 = vadd.f32 %v166, %v902
    %v904 = vpop.f32.mrb[0].mxu0
    %v905 = vpop.f32.mrb[0].mxu0
    %v906 = vadd.f32 %v166, %v905
    %v907 = vpop.f32.mrb[0].mxu0
    %908 = vmatprep.mubr.bf16.mxu0 0
    %909 = vmatmul.mubr.bf16.gmra.mrb[0].mxu0 %v571
    %v910 = vpop.f32.mrb[0].mxu0
    %v911 = vadd.f32 %v166, %v910
    %v912 = vpop.f32.mrb[0].mxu0
    %v913 = vpop.f32.mrb[0].mxu0
    %v914 = vadd.f32 %v166, %v913
    %v915 = vpop.f32.mrb[0].mxu0
    %916 = vmatprep.mubr.bf16.mxu0 0
    %917 = vmatmul.mubr.bf16.gmra.mrb[0].mxu0 %v574
    %v918 = vpop.f32.mrb[0].mxu0
    %v919 = vadd.f32 %v166, %v918
    %v920 = vpop.f32.mrb[0].mxu0
    %v921 = vpop.f32.mrb[0].mxu0
    %v922 = vadd.f32 %v166, %v921
    %v923 = vpop.f32.mrb[0].mxu0
    %924 = vmatprep.mubr.bf16.mxu0 0
    %925 = vmatmul.mubr.bf16.gmra.mrb[0].mxu0 %v577
    %v926 = vpop.f32.mrb[0].mxu0
    %v927 = vadd.f32 %v166, %v926
    %v928 = vpop.f32.mrb[0].mxu0
    %v929 = vpop.f32.mrb[0].mxu0
    %v930 = vadd.f32 %v166, %v929
    %v931 = vpop.f32.mrb[0].mxu0
    %932 = vmatprep.mubr.bf16.mxu0 0
    %933 = vmatmul.mubr.bf16.gmra.mrb[0].mxu0 %v580
    %v934 = vpop.f32.mrb[0].mxu0
    %v935 = vadd.f32 %v166, %v934
    %v936 = vpop.f32.mrb[0].mxu0
    %v937 = vpop.f32.mrb[0].mxu0
    %v938 = vadd.f32 %v166, %v937
    %v939 = vpop.f32.mrb[0].mxu0
    %940 = vmatprep.mubr.bf16.mxu0 0
    %941 = vmatmul.mubr.bf16.gmra.mrb[0].mxu0 %v583
    %v942 = vpop.f32.mrb[0].mxu0
    %v943 = vadd.f32 %v166, %v942
    %v944 = vpop.f32.mrb[0].mxu0
    %v945 = vpop.f32.mrb[0].mxu0
    %v946 = vadd.f32 %v166, %v945
    %v947 = vpop.f32.mrb[0].mxu0
    %948 = vmatprep.mubr.bf16.mxu0 0
    %949 = vmatmul.mubr.bf16.gmra.mrb[0].mxu0 %v586
    %v950 = vpop.f32.mrb[0].mxu0
    %v951 = vadd.f32 %v166, %v950
    %v952 = vpop.f32.mrb[0].mxu0
    %v953 = vpop.f32.mrb[0].mxu0
    %v954 = vadd.f32 %v166, %v953
    %v955 = vpop.f32.mrb[0].mxu0
    %956 = vmatprep.mubr.bf16.mxu0 0
    %957 = vmatmul.mubr.bf16.gmra.mrb[0].mxu0 %v589
    %v958 = vpop.f32.mrb[0].mxu0
    %v959 = vadd.f32 %v166, %v958
    %v960 = vpop.f32.mrb[0].mxu0
    %v961 = vpop.f32.mrb[0].mxu0
    %v962 = vadd.f32 %v166, %v961
    %v963 = vpop.f32.mrb[0].mxu0
    %964 = vmatprep.mubr.bf16.mxu0 0
    %965 = vmatmul.mubr.bf16.gmra.mrb[0].mxu0 %v592
    %v966 = vpop.f32.mrb[0].mxu0
    %v967 = vadd.f32 %v166, %v966
    %v968 = vpop.f32.mrb[0].mxu0
    %v969 = vpop.f32.mrb[0].mxu0
    %v970 = vadd.f32 %v166, %v969
    %v971 = vpop.f32.mrb[0].mxu0
    %972 = vmatprep.mubr.bf16.mxu0 0
    %973 = vmatmul.mubr.bf16.gmra.mrb[0].mxu0 %v595
    %v974 = vpop.f32.mrb[0].mxu0
    %v975 = vadd.f32 %v166, %v974
    %v976 = vpop.f32.mrb[0].mxu0
    %v977 = vpop.f32.mrb[0].mxu0
    %v978 = vadd.f32 %v166, %v977
    %v979 = vpop.f32.mrb[0].mxu0
    %980 = vmatprep.mubr.bf16.mxu0 0
    %981 = vmatmul.mubr.bf16.gmra.mrb[0].mxu0 %v598
    %v982 = vpop.f32.mrb[0].mxu0
    %v983 = vadd.f32 %v166, %v982
    %v984 = vpop.f32.mrb[0].mxu0
    %v985 = vpop.f32.mrb[0].mxu0
    %v986 = vadd.f32 %v166, %v985
    %v987 = vpop.f32.mrb[0].mxu0
    %988 = vmatprep.mubr.bf16.mxu0 0
    %989 = vmatmul.mubr.bf16.gmra.mrb[0].mxu0 %v601
    %v990 = vpop.f32.mrb[0].mxu0
    %v991 = vadd.f32 %v166, %v990
    %v992 = vpop.f32.mrb[0].mxu0
    %v993 = vpop.f32.mrb[0].mxu0
    %v994 = vadd.f32 %v166, %v993
    %v995 = vpop.f32.mrb[0].mxu0
    %996 = vmatprep.mubr.bf16.mxu0 0
    %997 = vmatmul.mubr.bf16.gmra.mrb[0].mxu0 %v604
    %v998 = vpop.f32.mrb[0].mxu0
    %v999 = vadd.f32 %v166, %v998
    %v1000 = vpop.f32.mrb[0].mxu0
    %v1001 = vpop.f32.mrb[0].mxu0
    %v1002 = vadd.f32 %v166, %v1001
    %v1003 = vpop.f32.mrb[0].mxu0
    %1004 = vmatprep.mubr.bf16.mxu0 0
    %1005 = vmatmul.mubr.bf16.gmra.mrb[0].mxu0 %v607
    %v1006 = vpop.f32.mrb[0].mxu0
    %v1007 = vadd.f32 %v166, %v1006
    %v1008 = vpop.f32.mrb[0].mxu0
    %v1009 = vpop.f32.mrb[0].mxu0
    %v1010 = vadd.f32 %v166, %v1009
    %v1011 = vpop.f32.mrb[0].mxu0
    %1012 = vmatprep.mubr.bf16.mxu0 0
    %1013 = vmatmul.mubr.bf16.gmra.mrb[0].mxu0 %v610
    %v1014 = vpop.f32.mrb[0].mxu0
    %v1015 = vadd.f32 %v166, %v1014
    %v1016 = vpop.f32.mrb[0].mxu0
    %v1017 = vpop.f32.mrb[0].mxu0
    %v1018 = vadd.f32 %v166, %v1017
    %v1019 = vpop.f32.mrb[0].mxu0
    %1020 = vmatprep.mubr.bf16.mxu0 0
    %1021 = vmatmul.mubr.bf16.gmra.mrb[0].mxu0 %v613
    %v1022 = vpop.f32.mrb[0].mxu0
    %v1023 = vadd.f32 %v166, %v1022
    %v1024 = vpop.f32.mrb[0].mxu0
    %v1025 = vpop.f32.mrb[0].mxu0
    %v1026 = vadd.f32 %v166, %v1025
    %v1027 = vpop.f32.mrb[0].mxu0
    %1028 = vmatprep.mubr.bf16.mxu0 0
    %1029 = vmatmul.mubr.bf16.gmra.mrb[0].mxu0 %v616
    %v1030 = vpop.f32.mrb[0].mxu0
    %v1031 = vadd.f32 %v166, %v1030
    %v1032 = vpop.f32.mrb[0].mxu0
    %v1033 = vpop.f32.mrb[0].mxu0
    %v1034 = vadd.f32 %v166, %v1033
    %v1035 = vpop.f32.mrb[0].mxu0
    %1036 = vmatprep.mubr.bf16.mxu0 0
    %1037 = vmatmul.mubr.bf16.gmra.mrb[0].mxu0 %v619
    %v1038 = vpop.f32.mrb[0].mxu0
    %v1039 = vadd.f32 %v166, %v1038
    %v1040 = vpop.f32.mrb[0].mxu0
    %v1041 = vpop.f32.mrb[0].mxu0
    %v1042 = vadd.f32 %v166, %v1041
    %v1043 = vpop.f32.mrb[0].mxu0
    %1044 = vmatprep.mubr.bf16.mxu0 0
    %1045 = vmatmul.mubr.bf16.gmra.mrb[0].mxu0 %v622
    %v1046 = vpop.f32.mrb[0].mxu0
    %v1047 = vadd.f32 %v166, %v1046
    %v1048 = vpop.f32.mrb[0].mxu0
    %v1049 = vpop.f32.mrb[0].mxu0
    %v1050 = vadd.f32 %v166, %v1049
    %v1051 = vpop.f32.mrb[0].mxu0
    %1052 = vmatprep.mubr.bf16.mxu0 0
    %1053 = vmatmul.mubr.bf16.gmra.mrb[0].mxu0 %v625
    %v1054 = vpop.f32.mrb[0].mxu0
    %v1055 = vadd.f32 %v166, %v1054
    %v1056 = vpop.f32.mrb[0].mxu0
    %v1057 = vpop.f32.mrb[0].mxu0
    %v1058 = vadd.f32 %v166, %v1057
    %v1059 = vpop.f32.mrb[0].mxu0
    %1060 = vmatprep.mubr.bf16.mxu0 0
    %1061 = vmatmul.mubr.bf16.gmra.mrb[0].mxu0 %v628
    %v1062 = vpop.f32.mrb[0].mxu0
    %v1063 = vadd.f32 %v166, %v1062
    %v1064 = vpop.f32.mrb[0].mxu0
    %v1065 = vpop.f32.mrb[0].mxu0
    %v1066 = vadd.f32 %v166, %v1065
    %v1067 = vpop.f32.mrb[0].mxu0
    %1068 = vmatprep.mubr.bf16.mxu0 0
    %1069 = vmatmul.mubr.bf16.gmra.mrb[0].mxu0 %v631
    %v1070 = vpop.f32.mrb[0].mxu0
    %v1071 = vadd.f32 %v166, %v1070
    %v1072 = vpop.f32.mrb[0].mxu0
    %v1073 = vpop.f32.mrb[0].mxu0
    %v1074 = vadd.f32 %v166, %v1073
    %v1075 = vpop.f32.mrb[0].mxu0
    %1076 = vmatprep.mubr.bf16.mxu0 0
    %1077 = vmatmul.mubr.bf16.gmra.mrb[0].mxu0 %v634
    %v1078 = vpop.f32.mrb[0].mxu0
    %v1079 = vadd.f32 %v166, %v1078
    %v1080 = vpop.f32.mrb[0].mxu0
    %v1081 = vpop.f32.mrb[0].mxu0
    %v1082 = vadd.f32 %v166, %v1081
    %v1083 = vpop.f32.mrb[0].mxu0
    %1084 = vmatprep.mubr.bf16.mxu0 0
    %1085 = vmatmul.mubr.bf16.gmra.mrb[0].mxu0 %v637
    %v1086 = vpop.f32.mrb[0].mxu0
    %v1087 = vadd.f32 %v166, %v1086
    %v1088 = vpop.f32.mrb[0].mxu0
    %v1089 = vpop.f32.mrb[0].mxu0
    %v1090 = vadd.f32 %v166, %v1089
    %v1091 = vpop.f32.mrb[0].mxu0
    %1092 = vmatprep.mubr.bf16.mxu0 0
    %1093 = vmatmul.mubr.bf16.gmra.mrb[0].mxu0 %v640
    %v1094 = vpop.f32.mrb[0].mxu0
    %v1095 = vadd.f32 %v166, %v1094
    %v1096 = vpop.f32.mrb[0].mxu0
    %v1097 = vpop.f32.mrb[0].mxu0
    %v1098 = vadd.f32 %v166, %v1097
    %v1099 = vpop.f32.mrb[0].mxu0
    %1100 = vmatprep.mubr.bf16.mxu0 0
    %1101 = vmatmul.mubr.bf16.gmra.mrb[0].mxu0 %v643
    %v1102 = vpop.f32.mrb[0].mxu0
    %v1103 = vadd.f32 %v166, %v1102
    %v1104 = vpop.f32.mrb[0].mxu0
    %v1105 = vpop.f32.mrb[0].mxu0
    %v1106 = vadd.f32 %v166, %v1105
    %v1107 = vpop.f32.mrb[0].mxu0
    %1108 = vmatprep.mubr.bf16.mxu0 0
    %1109 = vmatmul.mubr.bf16.gmra.mrb[0].mxu0 %v646
    %v1110 = vpop.f32.mrb[0].mxu0
    %v1111 = vadd.f32 %v166, %v1110
    %v1112 = vpop.f32.mrb[0].mxu0
    %v1113 = vpop.f32.mrb[0].mxu0
    %v1114 = vadd.f32 %v166, %v1113
    %v1115 = vpop.f32.mrb[0].mxu0
    %1116 = vmatprep.mubr.bf16.mxu0 0
    %1117 = vmatmul.mubr.bf16.gmra.mrb[0].mxu0 %v649
    %v1118 = vpop.f32.mrb[0].mxu0
    %v1119 = vadd.f32 %v166, %v1118
    %v1120 = vpop.f32.mrb[0].mxu0
    %v1121 = vpop.f32.mrb[0].mxu0
    %v1122 = vadd.f32 %v166, %v1121
    %v1123 = vpop.f32.mrb[0].mxu0
    %1124 = vmatprep.mubr.bf16.mxu0 0
    %1125 = vmatmul.mubr.bf16.gmra.mrb[0].mxu0 %v652
    %v1126 = vpop.f32.mrb[0].mxu0
    %v1127 = vadd.f32 %v166, %v1126
    %v1128 = vpop.f32.mrb[0].mxu0
    %v1129 = vpop.f32.mrb[0].mxu0
    %v1130 = vadd.f32 %v166, %v1129
    %v1131 = vpop.f32.mrb[0].mxu0
    %1132 = vmatprep.mubr.bf16.mxu0 0
    %1133 = vmatmul.mubr.bf16.gmra.mrb[0].mxu0 %v655
    %v1134 = vpop.f32.mrb[0].mxu0
    %v1135 = vadd.f32 %v166, %v1134
    %v1136 = vpop.f32.mrb[0].mxu0
    %v1137 = vpop.f32.mrb[0].mxu0
    %v1138 = vadd.f32 %v166, %v1137
    %v1139 = vpop.f32.mrb[0].mxu0
    %1140 = vmatprep.mubr.bf16.mxu0 0
    %1141 = vmatmul.mubr.bf16.gmra.mrb[0].mxu0 %v658
    %v1142 = vpop.f32.mrb[0].mxu0
    %v1143 = vadd.f32 %v166, %v1142
    %v1144 = vpop.f32.mrb[0].mxu0
    %v1145 = vpop.f32.mrb[0].mxu0
    %v1146 = vadd.f32 %v166, %v1145
    %v1147 = vpop.f32.mrb[0].mxu0
    %1148 = vmatprep.mubr.bf16.mxu0 0
    %1149 = vmatmul.mubr.bf16.gmra.mrb[0].mxu0 %v661
    %v1150 = vpop.f32.mrb[0].mxu0
    %v1151 = vadd.f32 %v166, %v1150
    %v1152 = vpop.f32.mrb[0].mxu0
    %v1153 = vpop.f32.mrb[0].mxu0
    %v1154 = vadd.f32 %v166, %v1153
    %v1155 = vpop.f32.mrb[0].mxu0
    %1156 = vmatprep.mubr.bf16.mxu0 0
    %1157 = vmatmul.mubr.bf16.gmra.mrb[0].mxu0 %v664
    %v1158 = vpop.f32.mrb[0].mxu0
    %v1159 = vadd.f32 %v166, %v1158
    %v1160 = vpop.f32.mrb[0].mxu0
    %v1161 = vpop.f32.mrb[0].mxu0
    %v1162 = vadd.f32 %v166, %v1161
    %v1163 = vpop.f32.mrb[0].mxu0
    %1164 = vmatprep.mubr.bf16.mxu0 0
    %1165 = vmatmul.mubr.bf16.gmra.mrb[0].mxu0 %v667
    %v1166 = vpop.f32.mrb[0].mxu0
    %v1167 = vadd.f32 %v166, %v1166
    %v1168 = vpop.f32.mrb[0].mxu0
    %v1169 = vpop.f32.mrb[0].mxu0
    %v1170 = vadd.f32 %v166, %v1169
    %v1171 = vpop.f32.mrb[0].mxu0
    %1172 = vmatprep.mubr.bf16.mxu0 0
    %1173 = vmatmul.mubr.bf16.gmra.mrb[0].mxu0 %v670
    %v1174 = vpop.f32.mrb[0].mxu0
    %v1175 = vadd.f32 %v166, %v1174
    %v1176 = vpop.f32.mrb[0].mxu0
    %v1177 = vpop.f32.mrb[0].mxu0
    %v1178 = vadd.f32 %v166, %v1177
    %v1179 = vpop.f32.mrb[0].mxu0
    %1180 = vmatprep.mubr.bf16.mxu0 0
    %1181 = vmatmul.mubr.bf16.gmra.mrb[0].mxu0 %v673
    %v1182 = vpop.f32.mrb[0].mxu0
    %v1183 = vadd.f32 %v166, %v1182
    %v1184 = vpop.f32.mrb[0].mxu0
    %v1185 = vpop.f32.mrb[0].mxu0
    %v1186 = vadd.f32 %v166, %v1185
    %v1187 = vpop.f32.mrb[0].mxu0
    %1188 = vmatprep.mubr.bf16.mxu0 0
    %1189 = vmatmul.mubr.bf16.gmra.mrb[0].mxu0 %v676
    %v1190 = vpop.f32.mrb[0].mxu0
    %v1191 = vadd.f32 %v166, %v1190
    %v1192 = vpop.f32.mrb[0].mxu0
    %v1193 = vpop.f32.mrb[0].mxu0
    %v1194 = vadd.f32 %v166, %v1193
    %v1195 = vpop.f32.mrb[0].mxu0
    %1196 = vmatprep.mubr.bf16.mxu0 0
    %1197 = vmatmul.mubr.bf16.gmra.mrb[0].mxu0 %v679
    %v1198 = vpop.f32.mrb[0].mxu0
    %v1199 = vadd.f32 %v166, %v1198
    %v1200 = vpop.f32.mrb[0].mxu0
    %v1201 = vpop.f32.mrb[0].mxu0
    %v1202 = vadd.f32 %v166, %v1201
    %v1203 = vpop.f32.mrb[0].mxu0
    %1204 = vmatprep.mubr.bf16.mxu0 0
    %1205 = vmatmul.mubr.bf16.gmra.mrb[0].mxu0 %v682
    %v1206 = vpop.f32.mrb[0].mxu0
    %v1207 = vadd.f32 %v166, %v1206
    %v1208 = vpop.f32.mrb[0].mxu0
    %v1209 = vpop.f32.mrb[0].mxu0
    %v1210 = vadd.f32 %v166, %v1209
    %v1211 = vpop.f32.mrb[0].mxu0
    %1212 = vmatprep.mubr.bf16.mxu0 0
    %1213 = vmatmul.mubr.bf16.gmra.mrb[0].mxu0 %v685
    %v1214 = vpop.f32.mrb[0].mxu0
    %v1215 = vadd.f32 %v166, %v1214
    %v1216 = vpop.f32.mrb[0].mxu0
    %v1217 = vpop.f32.mrb[0].mxu0
    %v1218 = vadd.f32 %v166, %v1217
    %v1219 = vpop.f32.mrb[0].mxu0
    %1220 = vmatprep.mubr.bf16.mxu0 0
    %1221 = vmatmul.mubr.bf16.gmra.mrb[0].mxu0 %v688
    %v1222 = vpop.f32.mrb[0].mxu0
    %v1223 = vadd.f32 %v166, %v1222
    %v1224 = vpop.f32.mrb[0].mxu0
    %v1225 = vpop.f32.mrb[0].mxu0
    %v1226 = vadd.f32 %v166, %v1225
    %v1227 = vpop.f32.mrb[0].mxu0
    %1228 = vmatprep.mubr.bf16.mxu0 0
    %1229 = vmatmul.mubr.bf16.gmra.mrb[0].mxu0 %v691
    %v1230 = vpop.f32.mrb[0].mxu0
    %v1231 = vadd.f32 %v166, %v1230
    %v1232 = vpop.f32.mrb[0].mxu0
    %v1233 = vpop.f32.mrb[0].mxu0
    %v1234 = vadd.f32 %v166, %v1233
    %v1235 = vpop.f32.mrb[0].mxu0
    %1236 = vmatprep.mubr.bf16.mxu0 0
    %1237 = vmatmul.mubr.bf16.gmra.mrb[0].mxu0 %v694
    %v1238 = vpop.f32.mrb[0].mxu0
    %v1239 = vadd.f32 %v166, %v1238
    %v1240 = vpop.f32.mrb[0].mxu0
    %v1241 = vpop.f32.mrb[0].mxu0
    %v1242 = vadd.f32 %v166, %v1241
    %v1243 = vpop.f32.mrb[0].mxu0
    %1244 = vdwg.mxu0
    %v1245 = vmax.f32 %v735, 0.0
    %v1246 = vmax.f32 %v738, 0.0
    %v1247 = vmax.f32 %v743, 0.0
    %v1248 = vmax.f32 %v746, 0.0
    %v1249 = vmax.f32 %v751, 0.0
    %v1250 = vmax.f32 %v754, 0.0
    %v1251 = vmax.f32 %v759, 0.0
    %v1252 = vmax.f32 %v762, 0.0
    %v1253 = vmax.f32 %v767, 0.0
    %v1254 = vmax.f32 %v770, 0.0
    %v1255 = vmax.f32 %v775, 0.0
    %v1256 = vmax.f32 %v778, 0.0
    %v1257 = vmax.f32 %v783, 0.0
    %v1258 = vmax.f32 %v786, 0.0
    %v1259 = vmax.f32 %v791, 0.0
    %v1260 = vmax.f32 %v794, 0.0
    %v1261 = vmax.f32 %v799, 0.0
    %v1262 = vmax.f32 %v802, 0.0
    %v1263 = vmax.f32 %v807, 0.0
    %v1264 = vmax.f32 %v810, 0.0
    %v1265 = vmax.f32 %v815, 0.0
    %v1266 = vmax.f32 %v818, 0.0
    %v1267 = vmax.f32 %v823, 0.0
    %v1268 = vmax.f32 %v826, 0.0
    %v1269 = vmax.f32 %v831, 0.0
    %v1270 = vmax.f32 %v834, 0.0
    %v1271 = vmax.f32 %v839, 0.0
    %v1272 = vmax.f32 %v842, 0.0
    %v1273 = vmax.f32 %v847, 0.0
    %v1274 = vmax.f32 %v850, 0.0
    %v1275 = vmax.f32 %v855, 0.0
    %v1276 = vmax.f32 %v858, 0.0
    %v1277 = vmax.f32 %v863, 0.0
    %v1278 = vmax.f32 %v866, 0.0
    %v1279 = vmax.f32 %v871, 0.0
    %v1280 = vmax.f32 %v874, 0.0
    %v1281 = vmax.f32 %v879, 0.0
    %v1282 = vmax.f32 %v882, 0.0
    %v1283 = vmax.f32 %v887, 0.0
    %v1284 = vmax.f32 %v890, 0.0
    %v1285 = vmax.f32 %v895, 0.0
    %v1286 = vmax.f32 %v898, 0.0
    %v1287 = vmax.f32 %v903, 0.0
    %v1288 = vmax.f32 %v906, 0.0
    %v1289 = vmax.f32 %v911, 0.0
    %v1290 = vmax.f32 %v914, 0.0
    %v1291 = vmax.f32 %v919, 0.0
    %v1292 = vmax.f32 %v922, 0.0
    %v1293 = vmax.f32 %v927, 0.0
    %v1294 = vmax.f32 %v930, 0.0
    %v1295 = vmax.f32 %v935, 0.0
    %v1296 = vmax.f32 %v938, 0.0
    %v1297 = vmax.f32 %v943, 0.0
    %v1298 = vmax.f32 %v946, 0.0
    %v1299 = vmax.f32 %v951, 0.0
    %v1300 = vmax.f32 %v954, 0.0
    %v1301 = vmax.f32 %v959, 0.0
    %v1302 = vmax.f32 %v962, 0.0
    %v1303 = vmax.f32 %v967, 0.0
    %v1304 = vmax.f32 %v970, 0.0
    %v1305 = vmax.f32 %v975, 0.0
    %v1306 = vmax.f32 %v978, 0.0
    %v1307 = vmax.f32 %v983, 0.0
    %v1308 = vmax.f32 %v986, 0.0
    %v1309 = vmax.f32 %v991, 0.0
    %v1310 = vmax.f32 %v994, 0.0
    %v1311 = vmax.f32 %v999, 0.0
    %v1312 = vmax.f32 %v1002, 0.0
    %v1313 = vmax.f32 %v1007, 0.0
    %v1314 = vmax.f32 %v1010, 0.0
    %v1315 = vmax.f32 %v1015, 0.0
    %v1316 = vmax.f32 %v1018, 0.0
    %v1317 = vmax.f32 %v1023, 0.0
    %v1318 = vmax.f32 %v1026, 0.0
    %v1319 = vmax.f32 %v1031, 0.0
    %v1320 = vmax.f32 %v1034, 0.0
    %v1321 = vmax.f32 %v1039, 0.0
    %v1322 = vmax.f32 %v1042, 0.0
    %v1323 = vmax.f32 %v1047, 0.0
    %v1324 = vmax.f32 %v1050, 0.0
    %v1325 = vmax.f32 %v1055, 0.0
    %v1326 = vmax.f32 %v1058, 0.0
    %v1327 = vmax.f32 %v1063, 0.0
    %v1328 = vmax.f32 %v1066, 0.0
    %v1329 = vmax.f32 %v1071, 0.0
    %v1330 = vmax.f32 %v1074, 0.0
    %v1331 = vmax.f32 %v1079, 0.0
    %v1332 = vmax.f32 %v1082, 0.0
    %v1333 = vmax.f32 %v1087, 0.0
    %v1334 = vmax.f32 %v1090, 0.0
    %v1335 = vmax.f32 %v1095, 0.0
    %v1336 = vmax.f32 %v1098, 0.0
    %v1337 = vmax.f32 %v1103, 0.0
    %v1338 = vmax.f32 %v1106, 0.0
    %v1339 = vmax.f32 %v1111, 0.0
    %v1340 = vmax.f32 %v1114, 0.0
    %v1341 = vmax.f32 %v1119, 0.0
    %v1342 = vmax.f32 %v1122, 0.0
    %v1343 = vmax.f32 %v1127, 0.0
    %v1344 = vmax.f32 %v1130, 0.0
    %v1345 = vmax.f32 %v1135, 0.0
    %v1346 = vmax.f32 %v1138, 0.0
    %v1347 = vmax.f32 %v1143, 0.0
    %v1348 = vmax.f32 %v1146, 0.0
    %v1349 = vmax.f32 %v1151, 0.0
    %v1350 = vmax.f32 %v1154, 0.0
    %v1351 = vmax.f32 %v1159, 0.0
    %v1352 = vmax.f32 %v1162, 0.0
    %v1353 = vmax.f32 %v1167, 0.0
    %v1354 = vmax.f32 %v1170, 0.0
    %v1355 = vmax.f32 %v1175, 0.0
    %v1356 = vmax.f32 %v1178, 0.0
    %v1357 = vmax.f32 %v1183, 0.0
    %v1358 = vmax.f32 %v1186, 0.0
    %v1359 = vmax.f32 %v1191, 0.0
    %v1360 = vmax.f32 %v1194, 0.0
    %v1361 = vmax.f32 %v1199, 0.0
    %v1362 = vmax.f32 %v1202, 0.0
    %v1363 = vmax.f32 %v1207, 0.0
    %v1364 = vmax.f32 %v1210, 0.0
    %v1365 = vmax.f32 %v1215, 0.0
    %v1366 = vmax.f32 %v1218, 0.0
    %v1367 = vmax.f32 %v1223, 0.0
    %v1368 = vmax.f32 %v1226, 0.0
    %v1369 = vmax.f32 %v1231, 0.0
    %v1370 = vmax.f32 %v1234, 0.0
    %v1371 = vmax.f32 %v1239, 0.0
    %v1372 = vmax.f32 %v1242, 0.0
    %v1373 = vadd.f32 %v1245, %v1246
    %v1374 = vadd.f32 %v1373, %v1247
    %v1375 = vadd.f32 %v1374, %v1248
    %v1376 = vadd.f32 %v1375, %v1249
    %v1377 = vadd.f32 %v1376, %v1250
    %v1378 = vadd.f32 %v1377, %v1251
    %v1379 = vadd.f32 %v1378, %v1252
    %v1380 = vadd.f32 %v1379, %v1253
    %v1381 = vadd.f32 %v1380, %v1254
    %v1382 = vadd.f32 %v1381, %v1255
    %v1383 = vadd.f32 %v1382, %v1256
    %v1384 = vadd.f32 %v1383, %v1257
    %v1385 = vadd.f32 %v1384, %v1258
    %v1386 = vadd.f32 %v1385, %v1259
    %v1387 = vadd.f32 %v1386, %v1260
    %v1388 = vrot.slane %v1387, 4
    %v1389 = vadd.f32 %v1387, %v1388
    %v1390 = vrot.slane %v1389, 2
    %v1391 = vadd.f32 %v1389, %v1390
    %v1392 = vrot.slane %v1391, 1
    %v1393 = vadd.f32 %v1391, %v1392
    %v1394 = vadd.f32 %v1261, %v1262
    %v1395 = vadd.f32 %v1394, %v1263
    %v1396 = vadd.f32 %v1395, %v1264
    %v1397 = vadd.f32 %v1396, %v1265
    %v1398 = vadd.f32 %v1397, %v1266
    %v1399 = vadd.f32 %v1398, %v1267
    %v1400 = vadd.f32 %v1399, %v1268
    %v1401 = vadd.f32 %v1400, %v1269
    %v1402 = vadd.f32 %v1401, %v1270
    %v1403 = vadd.f32 %v1402, %v1271
    %v1404 = vadd.f32 %v1403, %v1272
    %v1405 = vadd.f32 %v1404, %v1273
    %v1406 = vadd.f32 %v1405, %v1274
    %v1407 = vadd.f32 %v1406, %v1275
    %v1408 = vadd.f32 %v1407, %v1276
    %v1409 = vrot.slane %v1408, 4
    %v1410 = vadd.f32 %v1408, %v1409
    %v1411 = vrot.slane %v1410, 2
    %v1412 = vadd.f32 %v1410, %v1411
    %v1413 = vrot.slane %v1412, 1
    %v1414 = vadd.f32 %v1412, %v1413
    %v1415 = vadd.f32 %v1277, %v1278
    %v1416 = vadd.f32 %v1415, %v1279
    %v1417 = vadd.f32 %v1416, %v1280
    %v1418 = vadd.f32 %v1417, %v1281
    %v1419 = vadd.f32 %v1418, %v1282
    %v1420 = vadd.f32 %v1419, %v1283
    %v1421 = vadd.f32 %v1420, %v1284
    %v1422 = vadd.f32 %v1421, %v1285
    %v1423 = vadd.f32 %v1422, %v1286
    %v1424 = vadd.f32 %v1423, %v1287
    %v1425 = vadd.f32 %v1424, %v1288
    %v1426 = vadd.f32 %v1425, %v1289
    %v1427 = vadd.f32 %v1426, %v1290
    %v1428 = vadd.f32 %v1427, %v1291
    %v1429 = vadd.f32 %v1428, %v1292
    %v1430 = vrot.slane %v1429, 4
    %v1431 = vadd.f32 %v1429, %v1430
    %v1432 = vrot.slane %v1431, 2
    %v1433 = vadd.f32 %v1431, %v1432
    %v1434 = vrot.slane %v1433, 1
    %v1435 = vadd.f32 %v1433, %v1434
    %v1436 = vadd.f32 %v1293, %v1294
    %v1437 = vadd.f32 %v1436, %v1295
    %v1438 = vadd.f32 %v1437, %v1296
    %v1439 = vadd.f32 %v1438, %v1297
    %v1440 = vadd.f32 %v1439, %v1298
    %v1441 = vadd.f32 %v1440, %v1299
    %v1442 = vadd.f32 %v1441, %v1300
    %v1443 = vadd.f32 %v1442, %v1301
    %v1444 = vadd.f32 %v1443, %v1302
    %v1445 = vadd.f32 %v1444, %v1303
    %v1446 = vadd.f32 %v1445, %v1304
    %v1447 = vadd.f32 %v1446, %v1305
    %v1448 = vadd.f32 %v1447, %v1306
    %v1449 = vadd.f32 %v1448, %v1307
    %v1450 = vadd.f32 %v1449, %v1308
    %v1451 = vrot.slane %v1450, 4
    %v1452 = vadd.f32 %v1450, %v1451
    %v1453 = vrot.slane %v1452, 2
    %v1454 = vadd.f32 %v1452, %v1453
    %v1455 = vrot.slane %v1454, 1
    %v1456 = vadd.f32 %v1454, %v1455
    %v1457 = vadd.f32 %v1309, %v1310
    %v1458 = vadd.f32 %v1457, %v1311
    %v1459 = vadd.f32 %v1458, %v1312
    %v1460 = vadd.f32 %v1459, %v1313
    %v1461 = vadd.f32 %v1460, %v1314
    %v1462 = vadd.f32 %v1461, %v1315
    %v1463 = vadd.f32 %v1462, %v1316
    %v1464 = vadd.f32 %v1463, %v1317
    %v1465 = vadd.f32 %v1464, %v1318
    %v1466 = vadd.f32 %v1465, %v1319
    %v1467 = vadd.f32 %v1466, %v1320
    %v1468 = vadd.f32 %v1467, %v1321
    %v1469 = vadd.f32 %v1468, %v1322
    %v1470 = vadd.f32 %v1469, %v1323
    %v1471 = vadd.f32 %v1470, %v1324
    %v1472 = vrot.slane %v1471, 4
    %v1473 = vadd.f32 %v1471, %v1472
    %v1474 = vrot.slane %v1473, 2
    %v1475 = vadd.f32 %v1473, %v1474
    %v1476 = vrot.slane %v1475, 1
    %v1477 = vadd.f32 %v1475, %v1476
    %v1478 = vadd.f32 %v1325, %v1326
    %v1479 = vadd.f32 %v1478, %v1327
    %v1480 = vadd.f32 %v1479, %v1328
    %v1481 = vadd.f32 %v1480, %v1329
    %v1482 = vadd.f32 %v1481, %v1330
    %v1483 = vadd.f32 %v1482, %v1331
    %v1484 = vadd.f32 %v1483, %v1332
    %v1485 = vadd.f32 %v1484, %v1333
    %v1486 = vadd.f32 %v1485, %v1334
    %v1487 = vadd.f32 %v1486, %v1335
    %v1488 = vadd.f32 %v1487, %v1336
    %v1489 = vadd.f32 %v1488, %v1337
    %v1490 = vadd.f32 %v1489, %v1338
    %v1491 = vadd.f32 %v1490, %v1339
    %v1492 = vadd.f32 %v1491, %v1340
    %v1493 = vrot.slane %v1492, 4
    %v1494 = vadd.f32 %v1492, %v1493
    %v1495 = vrot.slane %v1494, 2
    %v1496 = vadd.f32 %v1494, %v1495
    %v1497 = vrot.slane %v1496, 1
    %v1498 = vadd.f32 %v1496, %v1497
    %v1499 = vadd.f32 %v1341, %v1342
    %v1500 = vadd.f32 %v1499, %v1343
    %v1501 = vadd.f32 %v1500, %v1344
    %v1502 = vadd.f32 %v1501, %v1345
    %v1503 = vadd.f32 %v1502, %v1346
    %v1504 = vadd.f32 %v1503, %v1347
    %v1505 = vadd.f32 %v1504, %v1348
    %v1506 = vadd.f32 %v1505, %v1349
    %v1507 = vadd.f32 %v1506, %v1350
    %v1508 = vadd.f32 %v1507, %v1351
    %v1509 = vadd.f32 %v1508, %v1352
    %v1510 = vadd.f32 %v1509, %v1353
    %v1511 = vadd.f32 %v1510, %v1354
    %v1512 = vadd.f32 %v1511, %v1355
    %v1513 = vadd.f32 %v1512, %v1356
    %v1514 = vrot.slane %v1513, 4
    %v1515 = vadd.f32 %v1513, %v1514
    %v1516 = vrot.slane %v1515, 2
    %v1517 = vadd.f32 %v1515, %v1516
    %v1518 = vrot.slane %v1517, 1
    %v1519 = vadd.f32 %v1517, %v1518
    %v1520 = vadd.f32 %v1357, %v1358
    %v1521 = vadd.f32 %v1520, %v1359
    %v1522 = vadd.f32 %v1521, %v1360
    %v1523 = vadd.f32 %v1522, %v1361
    %v1524 = vadd.f32 %v1523, %v1362
    %v1525 = vadd.f32 %v1524, %v1363
    %v1526 = vadd.f32 %v1525, %v1364
    %v1527 = vadd.f32 %v1526, %v1365
    %v1528 = vadd.f32 %v1527, %v1366
    %v1529 = vadd.f32 %v1528, %v1367
    %v1530 = vadd.f32 %v1529, %v1368
    %v1531 = vadd.f32 %v1530, %v1369
    %v1532 = vadd.f32 %v1531, %v1370
    %v1533 = vadd.f32 %v1532, %v1371
    %v1534 = vadd.f32 %v1533, %v1372
    %v1535 = vrot.slane %v1534, 4
    %v1536 = vadd.f32 %v1534, %v1535
    %v1537 = vrot.slane %v1536, 2
    %v1538 = vadd.f32 %v1536, %v1537
    %v1539 = vrot.slane %v1538, 1
    %v1540 = vadd.f32 %v1538, %v1539
    %v1541 = vadd.f32 %v1393, 0.0
    %v1542 = vadd.f32 %v1414, 0.0
    %v1543 = vadd.f32 %v1435, 0.0
    %v1544 = vadd.f32 %v1456, 0.0
    %v1545 = vadd.f32 %v1477, 0.0
    %v1546 = vadd.f32 %v1498, 0.0
    %v1547 = vadd.f32 %v1519, 0.0
    %v1548 = vadd.f32 %v1540, 0.0
    %s1549 = scalar_lea.vmem %s0, 64
    %v1550 = vld [vmem:[%s1549] sm:$0xf]
    %v1551 = vld [vmem:[%s1549 + $0x4] sm:$0xf]
    %v1552 = vld [vmem:[%s1549 + $0x8] sm:$0xf]
    %v1553 = vld [vmem:[%s1549 + $0xc] sm:$0xf]
    %v1554 = vld [vmem:[%s1549 + $0x10] sm:$0xf]
    %v1555 = vld [vmem:[%s1549 + $0x14] sm:$0xf]
    %v1556 = vld [vmem:[%s1549 + $0x18] sm:$0xf]
    %v1557 = vld [vmem:[%s1549 + $0x1c] sm:$0xf]
    %v1558 = vld [vmem:[%s1549 + $0x20] sm:$0xf]
    %v1559 = vld [vmem:[%s1549 + $0x24] sm:$0xf]
    %v1560 = vld [vmem:[%s1549 + $0x28] sm:$0xf]
    %v1561 = vld [vmem:[%s1549 + $0x2c] sm:$0xf]
    %v1562 = vld [vmem:[%s1549 + $0x30] sm:$0xf]
    %v1563 = vld [vmem:[%s1549 + $0x34] sm:$0xf]
    %v1564 = vld [vmem:[%s1549 + $0x38] sm:$0xf]
    %v1565 = vld [vmem:[%s1549 + $0x3c] sm:$0xf]
    %v1566 = vld [vmem:[%s1549 + $0x80] sm:$0xf]
    %v1567 = vld [vmem:[%s1549 + $0x84] sm:$0xf]
    %v1568 = vld [vmem:[%s1549 + $0x88] sm:$0xf]
    %v1569 = vld [vmem:[%s1549 + $0x8c] sm:$0xf]
    %v1570 = vld [vmem:[%s1549 + $0x90] sm:$0xf]
    %v1571 = vld [vmem:[%s1549 + $0x94] sm:$0xf]
    %v1572 = vld [vmem:[%s1549 + $0x98] sm:$0xf]
    %v1573 = vld [vmem:[%s1549 + $0x9c] sm:$0xf]
    %v1574 = vld [vmem:[%s1549 + $0xa0] sm:$0xf]
    %v1575 = vld [vmem:[%s1549 + $0xa4] sm:$0xf]
    %v1576 = vld [vmem:[%s1549 + $0xa8] sm:$0xf]
    %v1577 = vld [vmem:[%s1549 + $0xac] sm:$0xf]
    %v1578 = vld [vmem:[%s1549 + $0xb0] sm:$0xf]
    %v1579 = vld [vmem:[%s1549 + $0xb4] sm:$0xf]
    %v1580 = vld [vmem:[%s1549 + $0xb8] sm:$0xf]
    %v1581 = vld [vmem:[%s1549 + $0xbc] sm:$0xf]
    %v1582 = vld [vmem:[%s1549 + $0x100] sm:$0xf]
    %v1583 = vld [vmem:[%s1549 + $0x104] sm:$0xf]
    %v1584 = vld [vmem:[%s1549 + $0x108] sm:$0xf]
    %v1585 = vld [vmem:[%s1549 + $0x10c] sm:$0xf]
    %v1586 = vld [vmem:[%s1549 + $0x110] sm:$0xf]
    %v1587 = vld [vmem:[%s1549 + $0x114] sm:$0xf]
    %v1588 = vld [vmem:[%s1549 + $0x118] sm:$0xf]
    %v1589 = vld [vmem:[%s1549 + $0x11c] sm:$0xf]
    %v1590 = vld [vmem:[%s1549 + $0x120] sm:$0xf]
    %v1591 = vld [vmem:[%s1549 + $0x124] sm:$0xf]
    %v1592 = vld [vmem:[%s1549 + $0x128] sm:$0xf]
    %v1593 = vld [vmem:[%s1549 + $0x12c] sm:$0xf]
    %v1594 = vld [vmem:[%s1549 + $0x130] sm:$0xf]
    %v1595 = vld [vmem:[%s1549 + $0x134] sm:$0xf]
    %v1596 = vld [vmem:[%s1549 + $0x138] sm:$0xf]
    %v1597 = vld [vmem:[%s1549 + $0x13c] sm:$0xf]
    %v1598 = vld [vmem:[%s1549 + $0x180] sm:$0xf]
    %v1599 = vld [vmem:[%s1549 + $0x184] sm:$0xf]
    %v1600 = vld [vmem:[%s1549 + $0x188] sm:$0xf]
    %v1601 = vld [vmem:[%s1549 + $0x18c] sm:$0xf]
    %v1602 = vld [vmem:[%s1549 + $0x190] sm:$0xf]
    %v1603 = vld [vmem:[%s1549 + $0x194] sm:$0xf]
    %v1604 = vld [vmem:[%s1549 + $0x198] sm:$0xf]
    %v1605 = vld [vmem:[%s1549 + $0x19c] sm:$0xf]
    %v1606 = vld [vmem:[%s1549 + $0x1a0] sm:$0xf]
    %v1607 = vld [vmem:[%s1549 + $0x1a4] sm:$0xf]
    %v1608 = vld [vmem:[%s1549 + $0x1a8] sm:$0xf]
    %v1609 = vld [vmem:[%s1549 + $0x1ac] sm:$0xf]
    %v1610 = vld [vmem:[%s1549 + $0x1b0] sm:$0xf]
    %v1611 = vld [vmem:[%s1549 + $0x1b4] sm:$0xf]
    %v1612 = vld [vmem:[%s1549 + $0x1b8] sm:$0xf]
    %v1613 = vld [vmem:[%s1549 + $0x1bc] sm:$0xf]
    %v1614 = vld [vmem:[%s1549 + $0x200] sm:$0xf]
    %v1615 = vld [vmem:[%s1549 + $0x204] sm:$0xf]
    %v1616 = vld [vmem:[%s1549 + $0x208] sm:$0xf]
    %v1617 = vld [vmem:[%s1549 + $0x20c] sm:$0xf]
    %v1618 = vld [vmem:[%s1549 + $0x210] sm:$0xf]
    %v1619 = vld [vmem:[%s1549 + $0x214] sm:$0xf]
    %v1620 = vld [vmem:[%s1549 + $0x218] sm:$0xf]
    %v1621 = vld [vmem:[%s1549 + $0x21c] sm:$0xf]
    %v1622 = vld [vmem:[%s1549 + $0x220] sm:$0xf]
    %v1623 = vld [vmem:[%s1549 + $0x224] sm:$0xf]
    %v1624 = vld [vmem:[%s1549 + $0x228] sm:$0xf]
    %v1625 = vld [vmem:[%s1549 + $0x22c] sm:$0xf]
    %v1626 = vld [vmem:[%s1549 + $0x230] sm:$0xf]
    %v1627 = vld [vmem:[%s1549 + $0x234] sm:$0xf]
    %v1628 = vld [vmem:[%s1549 + $0x238] sm:$0xf]
    %v1629 = vld [vmem:[%s1549 + $0x23c] sm:$0xf]
    %v1630 = vld [vmem:[%s1549 + $0x280] sm:$0xf]
    %v1631 = vld [vmem:[%s1549 + $0x284] sm:$0xf]
    %v1632 = vld [vmem:[%s1549 + $0x288] sm:$0xf]
    %v1633 = vld [vmem:[%s1549 + $0x28c] sm:$0xf]
    %v1634 = vld [vmem:[%s1549 + $0x290] sm:$0xf]
    %v1635 = vld [vmem:[%s1549 + $0x294] sm:$0xf]
    %v1636 = vld [vmem:[%s1549 + $0x298] sm:$0xf]
    %v1637 = vld [vmem:[%s1549 + $0x29c] sm:$0xf]
    %v1638 = vld [vmem:[%s1549 + $0x2a0] sm:$0xf]
    %v1639 = vld [vmem:[%s1549 + $0x2a4] sm:$0xf]
    %v1640 = vld [vmem:[%s1549 + $0x2a8] sm:$0xf]
    %v1641 = vld [vmem:[%s1549 + $0x2ac] sm:$0xf]
    %v1642 = vld [vmem:[%s1549 + $0x2b0] sm:$0xf]
    %v1643 = vld [vmem:[%s1549 + $0x2b4] sm:$0xf]
    %v1644 = vld [vmem:[%s1549 + $0x2b8] sm:$0xf]
    %v1645 = vld [vmem:[%s1549 + $0x2bc] sm:$0xf]
    %v1646 = vld [vmem:[%s1549 + $0x300] sm:$0xf]
    %v1647 = vld [vmem:[%s1549 + $0x304] sm:$0xf]
    %v1648 = vld [vmem:[%s1549 + $0x308] sm:$0xf]
    %v1649 = vld [vmem:[%s1549 + $0x30c] sm:$0xf]
    %v1650 = vld [vmem:[%s1549 + $0x310] sm:$0xf]
    %v1651 = vld [vmem:[%s1549 + $0x314] sm:$0xf]
    %v1652 = vld [vmem:[%s1549 + $0x318] sm:$0xf]
    %v1653 = vld [vmem:[%s1549 + $0x31c] sm:$0xf]
    %v1654 = vld [vmem:[%s1549 + $0x320] sm:$0xf]
    %v1655 = vld [vmem:[%s1549 + $0x324] sm:$0xf]
    %v1656 = vld [vmem:[%s1549 + $0x328] sm:$0xf]
    %v1657 = vld [vmem:[%s1549 + $0x32c] sm:$0xf]
    %v1658 = vld [vmem:[%s1549 + $0x330] sm:$0xf]
    %v1659 = vld [vmem:[%s1549 + $0x334] sm:$0xf]
    %v1660 = vld [vmem:[%s1549 + $0x338] sm:$0xf]
    %v1661 = vld [vmem:[%s1549 + $0x33c] sm:$0xf]
    %v1662 = vld [vmem:[%s1549 + $0x380] sm:$0xf]
    %v1663 = vld [vmem:[%s1549 + $0x384] sm:$0xf]
    %v1664 = vld [vmem:[%s1549 + $0x388] sm:$0xf]
    %v1665 = vld [vmem:[%s1549 + $0x38c] sm:$0xf]
    %v1666 = vld [vmem:[%s1549 + $0x390] sm:$0xf]
    %v1667 = vld [vmem:[%s1549 + $0x394] sm:$0xf]
    %v1668 = vld [vmem:[%s1549 + $0x398] sm:$0xf]
    %v1669 = vld [vmem:[%s1549 + $0x39c] sm:$0xf]
    %v1670 = vld [vmem:[%s1549 + $0x3a0] sm:$0xf]
    %v1671 = vld [vmem:[%s1549 + $0x3a4] sm:$0xf]
    %v1672 = vld [vmem:[%s1549 + $0x3a8] sm:$0xf]
    %v1673 = vld [vmem:[%s1549 + $0x3ac] sm:$0xf]
    %v1674 = vld [vmem:[%s1549 + $0x3b0] sm:$0xf]
    %v1675 = vld [vmem:[%s1549 + $0x3b4] sm:$0xf]
    %v1676 = vld [vmem:[%s1549 + $0x3b8] sm:$0xf]
    %v1677 = vld [vmem:[%s1549 + $0x3bc] sm:$0xf]
    %v1806 = vunpack.c.l.b16 %v1550
    %v1807 = vunpack.c.l.b16 %v1551
    %v1808 = vunpack.c.l.b16 %v1552
    %v1809 = vunpack.c.l.b16 %v1553
    %v1810 = vunpack.c.l.b16 %v1554
    %v1811 = vunpack.c.l.b16 %v1555
    %v1812 = vunpack.c.l.b16 %v1556
    %v1813 = vunpack.c.l.b16 %v1557
    %v1814 = vunpack.c.l.b16 %v1558
    %v1815 = vunpack.c.l.b16 %v1559
    %v1816 = vunpack.c.l.b16 %v1560
    %v1817 = vunpack.c.l.b16 %v1561
    %v1818 = vunpack.c.l.b16 %v1562
    %v1819 = vunpack.c.l.b16 %v1563
    %v1820 = vunpack.c.l.b16 %v1564
    %v1821 = vunpack.c.l.b16 %v1565
    %v1822 = vunpack.c.l.b16 %v1566
    %v1823 = vunpack.c.l.b16 %v1567
    %v1824 = vunpack.c.l.b16 %v1568
    %v1825 = vunpack.c.l.b16 %v1569
    %v1826 = vunpack.c.l.b16 %v1570
    %v1827 = vunpack.c.l.b16 %v1571
    %v1828 = vunpack.c.l.b16 %v1572
    %v1829 = vunpack.c.l.b16 %v1573
    %v1830 = vunpack.c.l.b16 %v1574
    %v1831 = vunpack.c.l.b16 %v1575
    %v1832 = vunpack.c.l.b16 %v1576
    %v1833 = vunpack.c.l.b16 %v1577
    %v1834 = vunpack.c.l.b16 %v1578
    %v1835 = vunpack.c.l.b16 %v1579
    %v1836 = vunpack.c.l.b16 %v1580
    %v1837 = vunpack.c.l.b16 %v1581
    %v1838 = vunpack.c.l.b16 %v1582
    %v1839 = vunpack.c.l.b16 %v1583
    %v1840 = vunpack.c.l.b16 %v1584
    %v1841 = vunpack.c.l.b16 %v1585
    %v1842 = vunpack.c.l.b16 %v1586
    %v1843 = vunpack.c.l.b16 %v1587
    %v1844 = vunpack.c.l.b16 %v1588
    %v1845 = vunpack.c.l.b16 %v1589
    %v1846 = vunpack.c.l.b16 %v1590
    %v1847 = vunpack.c.l.b16 %v1591
    %v1848 = vunpack.c.l.b16 %v1592
    %v1849 = vunpack.c.l.b16 %v1593
    %v1850 = vunpack.c.l.b16 %v1594
    %v1851 = vunpack.c.l.b16 %v1595
    %v1852 = vunpack.c.l.b16 %v1596
    %v1853 = vunpack.c.l.b16 %v1597
    %v1854 = vunpack.c.l.b16 %v1598
    %v1855 = vunpack.c.l.b16 %v1599
    %v1856 = vunpack.c.l.b16 %v1600
    %v1857 = vunpack.c.l.b16 %v1601
    %v1858 = vunpack.c.l.b16 %v1602
    %v1859 = vunpack.c.l.b16 %v1603
    %v1860 = vunpack.c.l.b16 %v1604
    %v1861 = vunpack.c.l.b16 %v1605
    %v1862 = vunpack.c.l.b16 %v1606
    %v1863 = vunpack.c.l.b16 %v1607
    %v1864 = vunpack.c.l.b16 %v1608
    %v1865 = vunpack.c.l.b16 %v1609
    %v1866 = vunpack.c.l.b16 %v1610
    %v1867 = vunpack.c.l.b16 %v1611
    %v1868 = vunpack.c.l.b16 %v1612
    %v1869 = vunpack.c.l.b16 %v1613
    %v1870 = vunpack.c.l.b16 %v1614
    %v1871 = vunpack.c.l.b16 %v1615
    %v1872 = vunpack.c.l.b16 %v1616
    %v1873 = vunpack.c.l.b16 %v1617
    %v1874 = vunpack.c.l.b16 %v1618
    %v1875 = vunpack.c.l.b16 %v1619
    %v1876 = vunpack.c.l.b16 %v1620
    %v1877 = vunpack.c.l.b16 %v1621
    %v1878 = vunpack.c.l.b16 %v1622
    %v1879 = vunpack.c.l.b16 %v1623
    %v1880 = vunpack.c.l.b16 %v1624
    %v1881 = vunpack.c.l.b16 %v1625
    %v1882 = vunpack.c.l.b16 %v1626
    %v1883 = vunpack.c.l.b16 %v1627
    %v1884 = vunpack.c.l.b16 %v1628
    %v1885 = vunpack.c.l.b16 %v1629
    %v1886 = vunpack.c.l.b16 %v1630
    %v1887 = vunpack.c.l.b16 %v1631
    %v1888 = vunpack.c.l.b16 %v1632
    %v1889 = vunpack.c.l.b16 %v1633
    %v1890 = vunpack.c.l.b16 %v1634
    %v1891 = vunpack.c.l.b16 %v1635
    %v1892 = vunpack.c.l.b16 %v1636
    %v1893 = vunpack.c.l.b16 %v1637
    %v1894 = vunpack.c.l.b16 %v1638
    %v1895 = vunpack.c.l.b16 %v1639
    %v1896 = vunpack.c.l.b16 %v1640
    %v1897 = vunpack.c.l.b16 %v1641
    %v1898 = vunpack.c.l.b16 %v1642
    %v1899 = vunpack.c.l.b16 %v1643
    %v1900 = vunpack.c.l.b16 %v1644
    %v1901 = vunpack.c.l.b16 %v1645
    %v1902 = vunpack.c.l.b16 %v1646
    %v1903 = vunpack.c.l.b16 %v1647
    %v1904 = vunpack.c.l.b16 %v1648
    %v1905 = vunpack.c.l.b16 %v1649
    %v1906 = vunpack.c.l.b16 %v1650
    %v1907 = vunpack.c.l.b16 %v1651
    %v1908 = vunpack.c.l.b16 %v1652
    %v1909 = vunpack.c.l.b16 %v1653
    %v1910 = vunpack.c.l.b16 %v1654
    %v1911 = vunpack.c.l.b16 %v1655
    %v1912 = vunpack.c.l.b16 %v1656
    %v1913 = vunpack.c.l.b16 %v1657
    %v1914 = vunpack.c.l.b16 %v1658
    %v1915 = vunpack.c.l.b16 %v1659
    %v1916 = vunpack.c.l.b16 %v1660
    %v1917 = vunpack.c.l.b16 %v1661
    %v1918 = vunpack.c.l.b16 %v1662
    %v1919 = vunpack.c.l.b16 %v1663
    %v1920 = vunpack.c.l.b16 %v1664
    %v1921 = vunpack.c.l.b16 %v1665
    %v1922 = vunpack.c.l.b16 %v1666
    %v1923 = vunpack.c.l.b16 %v1667
    %v1924 = vunpack.c.l.b16 %v1668
    %v1925 = vunpack.c.l.b16 %v1669
    %v1926 = vunpack.c.l.b16 %v1670
    %v1927 = vunpack.c.l.b16 %v1671
    %v1928 = vunpack.c.l.b16 %v1672
    %v1929 = vunpack.c.l.b16 %v1673
    %v1930 = vunpack.c.l.b16 %v1674
    %v1931 = vunpack.c.l.b16 %v1675
    %v1932 = vunpack.c.l.b16 %v1676
    %v1933 = vunpack.c.l.b16 %v1677
    %v1934 = vpack.c.b16 %v1807, %v1806
    %v1935 = vpack.c.b16 %v1809, %v1808
    %v1936 = vpack.c.b16 %v1811, %v1810
    %v1937 = vpack.c.b16 %v1813, %v1812
    %v1938 = vpack.c.b16 %v1815, %v1814
    %v1939 = vpack.c.b16 %v1817, %v1816
    %v1940 = vpack.c.b16 %v1819, %v1818
    %v1941 = vpack.c.b16 %v1821, %v1820
    %v1942 = vpack.c.b16 %v1823, %v1822
    %v1943 = vpack.c.b16 %v1825, %v1824
    %v1944 = vpack.c.b16 %v1827, %v1826
    %v1945 = vpack.c.b16 %v1829, %v1828
    %v1946 = vpack.c.b16 %v1831, %v1830
    %v1947 = vpack.c.b16 %v1833, %v1832
    %v1948 = vpack.c.b16 %v1835, %v1834
    %v1949 = vpack.c.b16 %v1837, %v1836
    %v1950 = vpack.c.b16 %v1839, %v1838
    %v1951 = vpack.c.b16 %v1841, %v1840
    %v1952 = vpack.c.b16 %v1843, %v1842
    %v1953 = vpack.c.b16 %v1845, %v1844
    %v1954 = vpack.c.b16 %v1847, %v1846
    %v1955 = vpack.c.b16 %v1849, %v1848
    %v1956 = vpack.c.b16 %v1851, %v1850
    %v1957 = vpack.c.b16 %v1853, %v1852
    %v1958 = vpack.c.b16 %v1855, %v1854
    %v1959 = vpack.c.b16 %v1857, %v1856
    %v1960 = vpack.c.b16 %v1859, %v1858
    %v1961 = vpack.c.b16 %v1861, %v1860
    %v1962 = vpack.c.b16 %v1863, %v1862
    %v1963 = vpack.c.b16 %v1865, %v1864
    %v1964 = vpack.c.b16 %v1867, %v1866
    %v1965 = vpack.c.b16 %v1869, %v1868
    %v1966 = vpack.c.b16 %v1871, %v1870
    %v1967 = vpack.c.b16 %v1873, %v1872
    %v1968 = vpack.c.b16 %v1875, %v1874
    %v1969 = vpack.c.b16 %v1877, %v1876
    %v1970 = vpack.c.b16 %v1879, %v1878
    %v1971 = vpack.c.b16 %v1881, %v1880
    %v1972 = vpack.c.b16 %v1883, %v1882
    %v1973 = vpack.c.b16 %v1885, %v1884
    %v1974 = vpack.c.b16 %v1887, %v1886
    %v1975 = vpack.c.b16 %v1889, %v1888
    %v1976 = vpack.c.b16 %v1891, %v1890
    %v1977 = vpack.c.b16 %v1893, %v1892
    %v1978 = vpack.c.b16 %v1895, %v1894
    %v1979 = vpack.c.b16 %v1897, %v1896
    %v1980 = vpack.c.b16 %v1899, %v1898
    %v1981 = vpack.c.b16 %v1901, %v1900
    %v1982 = vpack.c.b16 %v1903, %v1902
    %v1983 = vpack.c.b16 %v1905, %v1904
    %v1984 = vpack.c.b16 %v1907, %v1906
    %v1985 = vpack.c.b16 %v1909, %v1908
    %v1986 = vpack.c.b16 %v1911, %v1910
    %v1987 = vpack.c.b16 %v1913, %v1912
    %v1988 = vpack.c.b16 %v1915, %v1914
    %v1989 = vpack.c.b16 %v1917, %v1916
    %v1990 = vpack.c.b16 %v1919, %v1918
    %v1991 = vpack.c.b16 %v1921, %v1920
    %v1992 = vpack.c.b16 %v1923, %v1922
    %v1993 = vpack.c.b16 %v1925, %v1924
    %v1994 = vpack.c.b16 %v1927, %v1926
    %v1995 = vpack.c.b16 %v1929, %v1928
    %v1996 = vpack.c.b16 %v1931, %v1930
    %v1997 = vpack.c.b16 %v1933, %v1932
    %v1999 = vsel %vm503, %v1934, 0
    %v2002 = vsel %vm503, %v1935, 0
    %v2005 = vsel %vm503, %v1936, 0
    %v2008 = vsel %vm503, %v1937, 0
    %v2011 = vsel %vm503, %v1938, 0
    %v2014 = vsel %vm503, %v1939, 0
    %v2017 = vsel %vm503, %v1940, 0
    %v2020 = vsel %vm503, %v1941, 0
    %v2023 = vsel %vm503, %v1942, 0
    %v2026 = vsel %vm503, %v1943, 0
    %v2029 = vsel %vm503, %v1944, 0
    %v2032 = vsel %vm503, %v1945, 0
    %v2035 = vsel %vm503, %v1946, 0
    %v2038 = vsel %vm503, %v1947, 0
    %v2041 = vsel %vm503, %v1948, 0
    %v2044 = vsel %vm503, %v1949, 0
    %v2047 = vsel %vm503, %v1950, 0
    %v2050 = vsel %vm503, %v1951, 0
    %v2053 = vsel %vm503, %v1952, 0
    %v2056 = vsel %vm503, %v1953, 0
    %v2059 = vsel %vm503, %v1954, 0
    %v2062 = vsel %vm503, %v1955, 0
    %v2065 = vsel %vm503, %v1956, 0
    %v2068 = vsel %vm503, %v1957, 0
    %v2071 = vsel %vm503, %v1958, 0
    %v2074 = vsel %vm503, %v1959, 0
    %v2077 = vsel %vm503, %v1960, 0
    %v2080 = vsel %vm503, %v1961, 0
    %v2083 = vsel %vm503, %v1962, 0
    %v2086 = vsel %vm503, %v1963, 0
    %v2089 = vsel %vm503, %v1964, 0
    %v2092 = vsel %vm503, %v1965, 0
    %v2095 = vsel %vm503, %v1966, 0
    %v2098 = vsel %vm503, %v1967, 0
    %v2101 = vsel %vm503, %v1968, 0
    %v2104 = vsel %vm503, %v1969, 0
    %v2107 = vsel %vm503, %v1970, 0
    %v2110 = vsel %vm503, %v1971, 0
    %v2113 = vsel %vm503, %v1972, 0
    %v2116 = vsel %vm503, %v1973, 0
    %v2119 = vsel %vm503, %v1974, 0
    %v2122 = vsel %vm503, %v1975, 0
    %v2125 = vsel %vm503, %v1976, 0
    %v2128 = vsel %vm503, %v1977, 0
    %v2131 = vsel %vm503, %v1978, 0
    %v2134 = vsel %vm503, %v1979, 0
    %v2137 = vsel %vm503, %v1980, 0
    %v2140 = vsel %vm503, %v1981, 0
    %v2143 = vsel %vm503, %v1982, 0
    %v2146 = vsel %vm503, %v1983, 0
    %v2149 = vsel %vm503, %v1984, 0
    %v2152 = vsel %vm503, %v1985, 0
    %v2155 = vsel %vm503, %v1986, 0
    %v2158 = vsel %vm503, %v1987, 0
    %v2161 = vsel %vm503, %v1988, 0
    %v2164 = vsel %vm503, %v1989, 0
    %v2167 = vsel %vm503, %v1990, 0
    %v2170 = vsel %vm503, %v1991, 0
    %v2173 = vsel %vm503, %v1992, 0
    %v2176 = vsel %vm503, %v1993, 0
    %v2179 = vsel %vm503, %v1994, 0
    %v2182 = vsel %vm503, %v1995, 0
    %v2185 = vsel %vm503, %v1996, 0
    %v2188 = vsel %vm503, %v1997, 0
    %2190 = vmatprep.subr.bf16.mxu0 0
    %2191 = vmatpush1.bf16.msra.mxu0 %v498
    %2192 = vmatprep.subr.bf16.mxu0 0
    %2193 = vmatpush1.bf16.msra.mxu0 %v499
    %2194 = vmatprep.subr.bf16.mxu0 0
    %2195 = vmatpush1.bf16.msra.mxu0 %v698
    %2196 = vmatprep.subr.bf16.mxu0 0
    %2197 = vmatpush1.bf16.msra.mxu0 0
    %2198 = vmatprep.subr.bf16.mxu0 0
    %2199 = vmatpush1.bf16.msra.mxu0 0
    %2200 = vmatprep.subr.bf16.mxu0 0
    %2201 = vmatpush1.bf16.msra.mxu0 0
    %2202 = vmatprep.subr.bf16.mxu0 0
    %2203 = vmatpush1.bf16.msra.mxu0 0
    %2204 = vmatprep.subr.bf16.mxu0 0
    %2205 = vmatpush1.bf16.msra.mxu0 0
    %2206 = vmatprep.subr.bf16.mxu0 0
    %2207 = vmatpush1.bf16.msra.mxu0 0
    %2208 = vmatprep.subr.bf16.mxu0 0
    %2209 = vmatpush1.bf16.msra.mxu0 0
    %2210 = vmatprep.subr.bf16.mxu0 0
    %2211 = vmatpush1.bf16.msra.mxu0 0
    %2212 = vmatprep.subr.bf16.mxu0 0
    %2213 = vmatpush1.bf16.msra.mxu0 0
    %2214 = vmatprep.subr.bf16.mxu0 0
    %2215 = vmatpush1.bf16.msra.mxu0 0
    %2216 = vmatprep.subr.bf16.mxu0 0
    %2217 = vmatpush1.bf16.msra.mxu0 0
    %2218 = vmatprep.subr.bf16.mxu0 0
    %2219 = vmatpush1.bf16.msra.mxu0 0
    %2220 = vmatprep.subr.bf16.mxu0 0
    %2221 = vmatpush1.bf16.msra.mxu0 0
    %2222 = vmatprep.mubr.bf16.mxu0 0
    %2223 = vmatmul.mubr.bf16.gmra.mrb[0].mxu0 %v1999
    %v2224 = vpop.f32.mrb[0].mxu0
    %v2225 = vadd.f32 %v166, %v2224
    %v2226 = vpop.f32.mrb[0].mxu0
    %v2227 = vpop.f32.mrb[0].mxu0
    %v2228 = vadd.f32 %v166, %v2227
    %v2229 = vpop.f32.mrb[0].mxu0
    %2230 = vmatprep.mubr.bf16.mxu0 0
    %2231 = vmatmul.mubr.bf16.gmra.mrb[0].mxu0 %v2002
    %v2232 = vpop.f32.mrb[0].mxu0
    %v2233 = vadd.f32 %v166, %v2232
    %v2234 = vpop.f32.mrb[0].mxu0
    %v2235 = vpop.f32.mrb[0].mxu0
    %v2236 = vadd.f32 %v166, %v2235
    %v2237 = vpop.f32.mrb[0].mxu0
    %2238 = vmatprep.mubr.bf16.mxu0 0
    %2239 = vmatmul.mubr.bf16.gmra.mrb[0].mxu0 %v2005
    %v2240 = vpop.f32.mrb[0].mxu0
    %v2241 = vadd.f32 %v166, %v2240
    %v2242 = vpop.f32.mrb[0].mxu0
    %v2243 = vpop.f32.mrb[0].mxu0
    %v2244 = vadd.f32 %v166, %v2243
    %v2245 = vpop.f32.mrb[0].mxu0
    %2246 = vmatprep.mubr.bf16.mxu0 0
    %2247 = vmatmul.mubr.bf16.gmra.mrb[0].mxu0 %v2008
    %v2248 = vpop.f32.mrb[0].mxu0
    %v2249 = vadd.f32 %v166, %v2248
    %v2250 = vpop.f32.mrb[0].mxu0
    %v2251 = vpop.f32.mrb[0].mxu0
    %v2252 = vadd.f32 %v166, %v2251
    %v2253 = vpop.f32.mrb[0].mxu0
    %2254 = vmatprep.mubr.bf16.mxu0 0
    %2255 = vmatmul.mubr.bf16.gmra.mrb[0].mxu0 %v2011
    %v2256 = vpop.f32.mrb[0].mxu0
    %v2257 = vadd.f32 %v166, %v2256
    %v2258 = vpop.f32.mrb[0].mxu0
    %v2259 = vpop.f32.mrb[0].mxu0
    %v2260 = vadd.f32 %v166, %v2259
    %v2261 = vpop.f32.mrb[0].mxu0
    %2262 = vmatprep.mubr.bf16.mxu0 0
    %2263 = vmatmul.mubr.bf16.gmra.mrb[0].mxu0 %v2014
    %v2264 = vpop.f32.mrb[0].mxu0
    %v2265 = vadd.f32 %v166, %v2264
    %v2266 = vpop.f32.mrb[0].mxu0
    %v2267 = vpop.f32.mrb[0].mxu0
    %v2268 = vadd.f32 %v166, %v2267
    %v2269 = vpop.f32.mrb[0].mxu0
    %2270 = vmatprep.mubr.bf16.mxu0 0
    %2271 = vmatmul.mubr.bf16.gmra.mrb[0].mxu0 %v2017
    %v2272 = vpop.f32.mrb[0].mxu0
    %v2273 = vadd.f32 %v166, %v2272
    %v2274 = vpop.f32.mrb[0].mxu0
    %v2275 = vpop.f32.mrb[0].mxu0
    %v2276 = vadd.f32 %v166, %v2275
    %v2277 = vpop.f32.mrb[0].mxu0
    %2278 = vmatprep.mubr.bf16.mxu0 0
    %2279 = vmatmul.mubr.bf16.gmra.mrb[0].mxu0 %v2020
    %v2280 = vpop.f32.mrb[0].mxu0
    %v2281 = vadd.f32 %v166, %v2280
    %v2282 = vpop.f32.mrb[0].mxu0
    %v2283 = vpop.f32.mrb[0].mxu0
    %v2284 = vadd.f32 %v166, %v2283
    %v2285 = vpop.f32.mrb[0].mxu0
    %2286 = vmatprep.mubr.bf16.mxu0 0
    %2287 = vmatmul.mubr.bf16.gmra.mrb[0].mxu0 %v2023
    %v2288 = vpop.f32.mrb[0].mxu0
    %v2289 = vadd.f32 %v166, %v2288
    %v2290 = vpop.f32.mrb[0].mxu0
    %v2291 = vpop.f32.mrb[0].mxu0
    %v2292 = vadd.f32 %v166, %v2291
    %v2293 = vpop.f32.mrb[0].mxu0
    %2294 = vmatprep.mubr.bf16.mxu0 0
    %2295 = vmatmul.mubr.bf16.gmra.mrb[0].mxu0 %v2026
    %v2296 = vpop.f32.mrb[0].mxu0
    %v2297 = vadd.f32 %v166, %v2296
    %v2298 = vpop.f32.mrb[0].mxu0
    %v2299 = vpop.f32.mrb[0].mxu0
    %v2300 = vadd.f32 %v166, %v2299
    %v2301 = vpop.f32.mrb[0].mxu0
    %2302 = vmatprep.mubr.bf16.mxu0 0
    %2303 = vmatmul.mubr.bf16.gmra.mrb[0].mxu0 %v2029
    %v2304 = vpop.f32.mrb[0].mxu0
    %v2305 = vadd.f32 %v166, %v2304
    %v2306 = vpop.f32.mrb[0].mxu0
    %v2307 = vpop.f32.mrb[0].mxu0
    %v2308 = vadd.f32 %v166, %v2307
    %v2309 = vpop.f32.mrb[0].mxu0
    %2310 = vmatprep.mubr.bf16.mxu0 0
    %2311 = vmatmul.mubr.bf16.gmra.mrb[0].mxu0 %v2032
    %v2312 = vpop.f32.mrb[0].mxu0
    %v2313 = vadd.f32 %v166, %v2312
    %v2314 = vpop.f32.mrb[0].mxu0
    %v2315 = vpop.f32.mrb[0].mxu0
    %v2316 = vadd.f32 %v166, %v2315
    %v2317 = vpop.f32.mrb[0].mxu0
    %2318 = vmatprep.mubr.bf16.mxu0 0
    %2319 = vmatmul.mubr.bf16.gmra.mrb[0].mxu0 %v2035
    %v2320 = vpop.f32.mrb[0].mxu0
    %v2321 = vadd.f32 %v166, %v2320
    %v2322 = vpop.f32.mrb[0].mxu0
    %v2323 = vpop.f32.mrb[0].mxu0
    %v2324 = vadd.f32 %v166, %v2323
    %v2325 = vpop.f32.mrb[0].mxu0
    %2326 = vmatprep.mubr.bf16.mxu0 0
    %2327 = vmatmul.mubr.bf16.gmra.mrb[0].mxu0 %v2038
    %v2328 = vpop.f32.mrb[0].mxu0
    %v2329 = vadd.f32 %v166, %v2328
    %v2330 = vpop.f32.mrb[0].mxu0
    %v2331 = vpop.f32.mrb[0].mxu0
    %v2332 = vadd.f32 %v166, %v2331
    %v2333 = vpop.f32.mrb[0].mxu0
    %2334 = vmatprep.mubr.bf16.mxu0 0
    %2335 = vmatmul.mubr.bf16.gmra.mrb[0].mxu0 %v2041
    %v2336 = vpop.f32.mrb[0].mxu0
    %v2337 = vadd.f32 %v166, %v2336
    %v2338 = vpop.f32.mrb[0].mxu0
    %v2339 = vpop.f32.mrb[0].mxu0
    %v2340 = vadd.f32 %v166, %v2339
    %v2341 = vpop.f32.mrb[0].mxu0
    %2342 = vmatprep.mubr.bf16.mxu0 0
    %2343 = vmatmul.mubr.bf16.gmra.mrb[0].mxu0 %v2044
    %v2344 = vpop.f32.mrb[0].mxu0
    %v2345 = vadd.f32 %v166, %v2344
    %v2346 = vpop.f32.mrb[0].mxu0
    %v2347 = vpop.f32.mrb[0].mxu0
    %v2348 = vadd.f32 %v166, %v2347
    %v2349 = vpop.f32.mrb[0].mxu0
    %2350 = vmatprep.mubr.bf16.mxu0 0
    %2351 = vmatmul.mubr.bf16.gmra.mrb[0].mxu0 %v2047
    %v2352 = vpop.f32.mrb[0].mxu0
    %v2353 = vadd.f32 %v166, %v2352
    %v2354 = vpop.f32.mrb[0].mxu0
    %v2355 = vpop.f32.mrb[0].mxu0
    %v2356 = vadd.f32 %v166, %v2355
    %v2357 = vpop.f32.mrb[0].mxu0
    %2358 = vmatprep.mubr.bf16.mxu0 0
    %2359 = vmatmul.mubr.bf16.gmra.mrb[0].mxu0 %v2050
    %v2360 = vpop.f32.mrb[0].mxu0
    %v2361 = vadd.f32 %v166, %v2360
    %v2362 = vpop.f32.mrb[0].mxu0
    %v2363 = vpop.f32.mrb[0].mxu0
    %v2364 = vadd.f32 %v166, %v2363
    %v2365 = vpop.f32.mrb[0].mxu0
    %2366 = vmatprep.mubr.bf16.mxu0 0
    %2367 = vmatmul.mubr.bf16.gmra.mrb[0].mxu0 %v2053
    %v2368 = vpop.f32.mrb[0].mxu0
    %v2369 = vadd.f32 %v166, %v2368
    %v2370 = vpop.f32.mrb[0].mxu0
    %v2371 = vpop.f32.mrb[0].mxu0
    %v2372 = vadd.f32 %v166, %v2371
    %v2373 = vpop.f32.mrb[0].mxu0
    %2374 = vmatprep.mubr.bf16.mxu0 0
    %2375 = vmatmul.mubr.bf16.gmra.mrb[0].mxu0 %v2056
    %v2376 = vpop.f32.mrb[0].mxu0
    %v2377 = vadd.f32 %v166, %v2376
    %v2378 = vpop.f32.mrb[0].mxu0
    %v2379 = vpop.f32.mrb[0].mxu0
    %v2380 = vadd.f32 %v166, %v2379
    %v2381 = vpop.f32.mrb[0].mxu0
    %2382 = vmatprep.mubr.bf16.mxu0 0
    %2383 = vmatmul.mubr.bf16.gmra.mrb[0].mxu0 %v2059
    %v2384 = vpop.f32.mrb[0].mxu0
    %v2385 = vadd.f32 %v166, %v2384
    %v2386 = vpop.f32.mrb[0].mxu0
    %v2387 = vpop.f32.mrb[0].mxu0
    %v2388 = vadd.f32 %v166, %v2387
    %v2389 = vpop.f32.mrb[0].mxu0
    %2390 = vmatprep.mubr.bf16.mxu0 0
    %2391 = vmatmul.mubr.bf16.gmra.mrb[0].mxu0 %v2062
    %v2392 = vpop.f32.mrb[0].mxu0
    %v2393 = vadd.f32 %v166, %v2392
    %v2394 = vpop.f32.mrb[0].mxu0
    %v2395 = vpop.f32.mrb[0].mxu0
    %v2396 = vadd.f32 %v166, %v2395
    %v2397 = vpop.f32.mrb[0].mxu0
    %2398 = vmatprep.mubr.bf16.mxu0 0
    %2399 = vmatmul.mubr.bf16.gmra.mrb[0].mxu0 %v2065
    %v2400 = vpop.f32.mrb[0].mxu0
    %v2401 = vadd.f32 %v166, %v2400
    %v2402 = vpop.f32.mrb[0].mxu0
    %v2403 = vpop.f32.mrb[0].mxu0
    %v2404 = vadd.f32 %v166, %v2403
    %v2405 = vpop.f32.mrb[0].mxu0
    %2406 = vmatprep.mubr.bf16.mxu0 0
    %2407 = vmatmul.mubr.bf16.gmra.mrb[0].mxu0 %v2068
    %v2408 = vpop.f32.mrb[0].mxu0
    %v2409 = vadd.f32 %v166, %v2408
    %v2410 = vpop.f32.mrb[0].mxu0
    %v2411 = vpop.f32.mrb[0].mxu0
    %v2412 = vadd.f32 %v166, %v2411
    %v2413 = vpop.f32.mrb[0].mxu0
    %2414 = vmatprep.mubr.bf16.mxu0 0
    %2415 = vmatmul.mubr.bf16.gmra.mrb[0].mxu0 %v2071
    %v2416 = vpop.f32.mrb[0].mxu0
    %v2417 = vadd.f32 %v166, %v2416
    %v2418 = vpop.f32.mrb[0].mxu0
    %v2419 = vpop.f32.mrb[0].mxu0
    %v2420 = vadd.f32 %v166, %v2419
    %v2421 = vpop.f32.mrb[0].mxu0
    %2422 = vmatprep.mubr.bf16.mxu0 0
    %2423 = vmatmul.mubr.bf16.gmra.mrb[0].mxu0 %v2074
    %v2424 = vpop.f32.mrb[0].mxu0
    %v2425 = vadd.f32 %v166, %v2424
    %v2426 = vpop.f32.mrb[0].mxu0
    %v2427 = vpop.f32.mrb[0].mxu0
    %v2428 = vadd.f32 %v166, %v2427
    %v2429 = vpop.f32.mrb[0].mxu0
    %2430 = vmatprep.mubr.bf16.mxu0 0
    %2431 = vmatmul.mubr.bf16.gmra.mrb[0].mxu0 %v2077
    %v2432 = vpop.f32.mrb[0].mxu0
    %v2433 = vadd.f32 %v166, %v2432
    %v2434 = vpop.f32.mrb[0].mxu0
    %v2435 = vpop.f32.mrb[0].mxu0
    %v2436 = vadd.f32 %v166, %v2435
    %v2437 = vpop.f32.mrb[0].mxu0
    %2438 = vmatprep.mubr.bf16.mxu0 0
    %2439 = vmatmul.mubr.bf16.gmra.mrb[0].mxu0 %v2080
    %v2440 = vpop.f32.mrb[0].mxu0
    %v2441 = vadd.f32 %v166, %v2440
    %v2442 = vpop.f32.mrb[0].mxu0
    %v2443 = vpop.f32.mrb[0].mxu0
    %v2444 = vadd.f32 %v166, %v2443
    %v2445 = vpop.f32.mrb[0].mxu0
    %2446 = vmatprep.mubr.bf16.mxu0 0
    %2447 = vmatmul.mubr.bf16.gmra.mrb[0].mxu0 %v2083
    %v2448 = vpop.f32.mrb[0].mxu0
    %v2449 = vadd.f32 %v166, %v2448
    %v2450 = vpop.f32.mrb[0].mxu0
    %v2451 = vpop.f32.mrb[0].mxu0
    %v2452 = vadd.f32 %v166, %v2451
    %v2453 = vpop.f32.mrb[0].mxu0
    %2454 = vmatprep.mubr.bf16.mxu0 0
    %2455 = vmatmul.mubr.bf16.gmra.mrb[0].mxu0 %v2086
    %v2456 = vpop.f32.mrb[0].mxu0
    %v2457 = vadd.f32 %v166, %v2456
    %v2458 = vpop.f32.mrb[0].mxu0
    %v2459 = vpop.f32.mrb[0].mxu0
    %v2460 = vadd.f32 %v166, %v2459
    %v2461 = vpop.f32.mrb[0].mxu0
    %2462 = vmatprep.mubr.bf16.mxu0 0
    %2463 = vmatmul.mubr.bf16.gmra.mrb[0].mxu0 %v2089
    %v2464 = vpop.f32.mrb[0].mxu0
    %v2465 = vadd.f32 %v166, %v2464
    %v2466 = vpop.f32.mrb[0].mxu0
    %v2467 = vpop.f32.mrb[0].mxu0
    %v2468 = vadd.f32 %v166, %v2467
    %v2469 = vpop.f32.mrb[0].mxu0
    %2470 = vmatprep.mubr.bf16.mxu0 0
    %2471 = vmatmul.mubr.bf16.gmra.mrb[0].mxu0 %v2092
    %v2472 = vpop.f32.mrb[0].mxu0
    %v2473 = vadd.f32 %v166, %v2472
    %v2474 = vpop.f32.mrb[0].mxu0
    %v2475 = vpop.f32.mrb[0].mxu0
    %v2476 = vadd.f32 %v166, %v2475
    %v2477 = vpop.f32.mrb[0].mxu0
    %2478 = vmatprep.mubr.bf16.mxu0 0
    %2479 = vmatmul.mubr.bf16.gmra.mrb[0].mxu0 %v2095
    %v2480 = vpop.f32.mrb[0].mxu0
    %v2481 = vadd.f32 %v166, %v2480
    %v2482 = vpop.f32.mrb[0].mxu0
    %v2483 = vpop.f32.mrb[0].mxu0
    %v2484 = vadd.f32 %v166, %v2483
    %v2485 = vpop.f32.mrb[0].mxu0
    %2486 = vmatprep.mubr.bf16.mxu0 0
    %2487 = vmatmul.mubr.bf16.gmra.mrb[0].mxu0 %v2098
    %v2488 = vpop.f32.mrb[0].mxu0
    %v2489 = vadd.f32 %v166, %v2488
    %v2490 = vpop.f32.mrb[0].mxu0
    %v2491 = vpop.f32.mrb[0].mxu0
    %v2492 = vadd.f32 %v166, %v2491
    %v2493 = vpop.f32.mrb[0].mxu0
    %2494 = vmatprep.mubr.bf16.mxu0 0
    %2495 = vmatmul.mubr.bf16.gmra.mrb[0].mxu0 %v2101
    %v2496 = vpop.f32.mrb[0].mxu0
    %v2497 = vadd.f32 %v166, %v2496
    %v2498 = vpop.f32.mrb[0].mxu0
    %v2499 = vpop.f32.mrb[0].mxu0
    %v2500 = vadd.f32 %v166, %v2499
    %v2501 = vpop.f32.mrb[0].mxu0
    %2502 = vmatprep.mubr.bf16.mxu0 0
    %2503 = vmatmul.mubr.bf16.gmra.mrb[0].mxu0 %v2104
    %v2504 = vpop.f32.mrb[0].mxu0
    %v2505 = vadd.f32 %v166, %v2504
    %v2506 = vpop.f32.mrb[0].mxu0
    %v2507 = vpop.f32.mrb[0].mxu0
    %v2508 = vadd.f32 %v166, %v2507
    %v2509 = vpop.f32.mrb[0].mxu0
    %2510 = vmatprep.mubr.bf16.mxu0 0
    %2511 = vmatmul.mubr.bf16.gmra.mrb[0].mxu0 %v2107
    %v2512 = vpop.f32.mrb[0].mxu0
    %v2513 = vadd.f32 %v166, %v2512
    %v2514 = vpop.f32.mrb[0].mxu0
    %v2515 = vpop.f32.mrb[0].mxu0
    %v2516 = vadd.f32 %v166, %v2515
    %v2517 = vpop.f32.mrb[0].mxu0
    %2518 = vmatprep.mubr.bf16.mxu0 0
    %2519 = vmatmul.mubr.bf16.gmra.mrb[0].mxu0 %v2110
    %v2520 = vpop.f32.mrb[0].mxu0
    %v2521 = vadd.f32 %v166, %v2520
    %v2522 = vpop.f32.mrb[0].mxu0
    %v2523 = vpop.f32.mrb[0].mxu0
    %v2524 = vadd.f32 %v166, %v2523
    %v2525 = vpop.f32.mrb[0].mxu0
    %2526 = vmatprep.mubr.bf16.mxu0 0
    %2527 = vmatmul.mubr.bf16.gmra.mrb[0].mxu0 %v2113
    %v2528 = vpop.f32.mrb[0].mxu0
    %v2529 = vadd.f32 %v166, %v2528
    %v2530 = vpop.f32.mrb[0].mxu0
    %v2531 = vpop.f32.mrb[0].mxu0
    %v2532 = vadd.f32 %v166, %v2531
    %v2533 = vpop.f32.mrb[0].mxu0
    %2534 = vmatprep.mubr.bf16.mxu0 0
    %2535 = vmatmul.mubr.bf16.gmra.mrb[0].mxu0 %v2116
    %v2536 = vpop.f32.mrb[0].mxu0
    %v2537 = vadd.f32 %v166, %v2536
    %v2538 = vpop.f32.mrb[0].mxu0
    %v2539 = vpop.f32.mrb[0].mxu0
    %v2540 = vadd.f32 %v166, %v2539
    %v2541 = vpop.f32.mrb[0].mxu0
    %2542 = vmatprep.mubr.bf16.mxu0 0
    %2543 = vmatmul.mubr.bf16.gmra.mrb[0].mxu0 %v2119
    %v2544 = vpop.f32.mrb[0].mxu0
    %v2545 = vadd.f32 %v166, %v2544
    %v2546 = vpop.f32.mrb[0].mxu0
    %v2547 = vpop.f32.mrb[0].mxu0
    %v2548 = vadd.f32 %v166, %v2547
    %v2549 = vpop.f32.mrb[0].mxu0
    %2550 = vmatprep.mubr.bf16.mxu0 0
    %2551 = vmatmul.mubr.bf16.gmra.mrb[0].mxu0 %v2122
    %v2552 = vpop.f32.mrb[0].mxu0
    %v2553 = vadd.f32 %v166, %v2552
    %v2554 = vpop.f32.mrb[0].mxu0
    %v2555 = vpop.f32.mrb[0].mxu0
    %v2556 = vadd.f32 %v166, %v2555
    %v2557 = vpop.f32.mrb[0].mxu0
    %2558 = vmatprep.mubr.bf16.mxu0 0
    %2559 = vmatmul.mubr.bf16.gmra.mrb[0].mxu0 %v2125
    %v2560 = vpop.f32.mrb[0].mxu0
    %v2561 = vadd.f32 %v166, %v2560
    %v2562 = vpop.f32.mrb[0].mxu0
    %v2563 = vpop.f32.mrb[0].mxu0
    %v2564 = vadd.f32 %v166, %v2563
    %v2565 = vpop.f32.mrb[0].mxu0
    %2566 = vmatprep.mubr.bf16.mxu0 0
    %2567 = vmatmul.mubr.bf16.gmra.mrb[0].mxu0 %v2128
    %v2568 = vpop.f32.mrb[0].mxu0
    %v2569 = vadd.f32 %v166, %v2568
    %v2570 = vpop.f32.mrb[0].mxu0
    %v2571 = vpop.f32.mrb[0].mxu0
    %v2572 = vadd.f32 %v166, %v2571
    %v2573 = vpop.f32.mrb[0].mxu0
    %2574 = vmatprep.mubr.bf16.mxu0 0
    %2575 = vmatmul.mubr.bf16.gmra.mrb[0].mxu0 %v2131
    %v2576 = vpop.f32.mrb[0].mxu0
    %v2577 = vadd.f32 %v166, %v2576
    %v2578 = vpop.f32.mrb[0].mxu0
    %v2579 = vpop.f32.mrb[0].mxu0
    %v2580 = vadd.f32 %v166, %v2579
    %v2581 = vpop.f32.mrb[0].mxu0
    %2582 = vmatprep.mubr.bf16.mxu0 0
    %2583 = vmatmul.mubr.bf16.gmra.mrb[0].mxu0 %v2134
    %v2584 = vpop.f32.mrb[0].mxu0
    %v2585 = vadd.f32 %v166, %v2584
    %v2586 = vpop.f32.mrb[0].mxu0
    %v2587 = vpop.f32.mrb[0].mxu0
    %v2588 = vadd.f32 %v166, %v2587
    %v2589 = vpop.f32.mrb[0].mxu0
    %2590 = vmatprep.mubr.bf16.mxu0 0
    %2591 = vmatmul.mubr.bf16.gmra.mrb[0].mxu0 %v2137
    %v2592 = vpop.f32.mrb[0].mxu0
    %v2593 = vadd.f32 %v166, %v2592
    %v2594 = vpop.f32.mrb[0].mxu0
    %v2595 = vpop.f32.mrb[0].mxu0
    %v2596 = vadd.f32 %v166, %v2595
    %v2597 = vpop.f32.mrb[0].mxu0
    %2598 = vmatprep.mubr.bf16.mxu0 0
    %2599 = vmatmul.mubr.bf16.gmra.mrb[0].mxu0 %v2140
    %v2600 = vpop.f32.mrb[0].mxu0
    %v2601 = vadd.f32 %v166, %v2600
    %v2602 = vpop.f32.mrb[0].mxu0
    %v2603 = vpop.f32.mrb[0].mxu0
    %v2604 = vadd.f32 %v166, %v2603
    %v2605 = vpop.f32.mrb[0].mxu0
    %2606 = vmatprep.mubr.bf16.mxu0 0
    %2607 = vmatmul.mubr.bf16.gmra.mrb[0].mxu0 %v2143
    %v2608 = vpop.f32.mrb[0].mxu0
    %v2609 = vadd.f32 %v166, %v2608
    %v2610 = vpop.f32.mrb[0].mxu0
    %v2611 = vpop.f32.mrb[0].mxu0
    %v2612 = vadd.f32 %v166, %v2611
    %v2613 = vpop.f32.mrb[0].mxu0
    %2614 = vmatprep.mubr.bf16.mxu0 0
    %2615 = vmatmul.mubr.bf16.gmra.mrb[0].mxu0 %v2146
    %v2616 = vpop.f32.mrb[0].mxu0
    %v2617 = vadd.f32 %v166, %v2616
    %v2618 = vpop.f32.mrb[0].mxu0
    %v2619 = vpop.f32.mrb[0].mxu0
    %v2620 = vadd.f32 %v166, %v2619
    %v2621 = vpop.f32.mrb[0].mxu0
    %2622 = vmatprep.mubr.bf16.mxu0 0
    %2623 = vmatmul.mubr.bf16.gmra.mrb[0].mxu0 %v2149
    %v2624 = vpop.f32.mrb[0].mxu0
    %v2625 = vadd.f32 %v166, %v2624
    %v2626 = vpop.f32.mrb[0].mxu0
    %v2627 = vpop.f32.mrb[0].mxu0
    %v2628 = vadd.f32 %v166, %v2627
    %v2629 = vpop.f32.mrb[0].mxu0
    %2630 = vmatprep.mubr.bf16.mxu0 0
    %2631 = vmatmul.mubr.bf16.gmra.mrb[0].mxu0 %v2152
    %v2632 = vpop.f32.mrb[0].mxu0
    %v2633 = vadd.f32 %v166, %v2632
    %v2634 = vpop.f32.mrb[0].mxu0
    %v2635 = vpop.f32.mrb[0].mxu0
    %v2636 = vadd.f32 %v166, %v2635
    %v2637 = vpop.f32.mrb[0].mxu0
    %2638 = vmatprep.mubr.bf16.mxu0 0
    %2639 = vmatmul.mubr.bf16.gmra.mrb[0].mxu0 %v2155
    %v2640 = vpop.f32.mrb[0].mxu0
    %v2641 = vadd.f32 %v166, %v2640
    %v2642 = vpop.f32.mrb[0].mxu0
    %v2643 = vpop.f32.mrb[0].mxu0
    %v2644 = vadd.f32 %v166, %v2643
    %v2645 = vpop.f32.mrb[0].mxu0
    %2646 = vmatprep.mubr.bf16.mxu0 0
    %2647 = vmatmul.mubr.bf16.gmra.mrb[0].mxu0 %v2158
    %v2648 = vpop.f32.mrb[0].mxu0
    %v2649 = vadd.f32 %v166, %v2648
    %v2650 = vpop.f32.mrb[0].mxu0
    %v2651 = vpop.f32.mrb[0].mxu0
    %v2652 = vadd.f32 %v166, %v2651
    %v2653 = vpop.f32.mrb[0].mxu0
    %2654 = vmatprep.mubr.bf16.mxu0 0
    %2655 = vmatmul.mubr.bf16.gmra.mrb[0].mxu0 %v2161
    %v2656 = vpop.f32.mrb[0].mxu0
    %v2657 = vadd.f32 %v166, %v2656
    %v2658 = vpop.f32.mrb[0].mxu0
    %v2659 = vpop.f32.mrb[0].mxu0
    %v2660 = vadd.f32 %v166, %v2659
    %v2661 = vpop.f32.mrb[0].mxu0
    %2662 = vmatprep.mubr.bf16.mxu0 0
    %2663 = vmatmul.mubr.bf16.gmra.mrb[0].mxu0 %v2164
    %v2664 = vpop.f32.mrb[0].mxu0
    %v2665 = vadd.f32 %v166, %v2664
    %v2666 = vpop.f32.mrb[0].mxu0
    %v2667 = vpop.f32.mrb[0].mxu0
    %v2668 = vadd.f32 %v166, %v2667
    %v2669 = vpop.f32.mrb[0].mxu0
    %2670 = vmatprep.mubr.bf16.mxu0 0
    %2671 = vmatmul.mubr.bf16.gmra.mrb[0].mxu0 %v2167
    %v2672 = vpop.f32.mrb[0].mxu0
    %v2673 = vadd.f32 %v166, %v2672
    %v2674 = vpop.f32.mrb[0].mxu0
    %v2675 = vpop.f32.mrb[0].mxu0
    %v2676 = vadd.f32 %v166, %v2675
    %v2677 = vpop.f32.mrb[0].mxu0
    %2678 = vmatprep.mubr.bf16.mxu0 0
    %2679 = vmatmul.mubr.bf16.gmra.mrb[0].mxu0 %v2170
    %v2680 = vpop.f32.mrb[0].mxu0
    %v2681 = vadd.f32 %v166, %v2680
    %v2682 = vpop.f32.mrb[0].mxu0
    %v2683 = vpop.f32.mrb[0].mxu0
    %v2684 = vadd.f32 %v166, %v2683
    %v2685 = vpop.f32.mrb[0].mxu0
    %2686 = vmatprep.mubr.bf16.mxu0 0
    %2687 = vmatmul.mubr.bf16.gmra.mrb[0].mxu0 %v2173
    %v2688 = vpop.f32.mrb[0].mxu0
    %v2689 = vadd.f32 %v166, %v2688
    %v2690 = vpop.f32.mrb[0].mxu0
    %v2691 = vpop.f32.mrb[0].mxu0
    %v2692 = vadd.f32 %v166, %v2691
    %v2693 = vpop.f32.mrb[0].mxu0
    %2694 = vmatprep.mubr.bf16.mxu0 0
    %2695 = vmatmul.mubr.bf16.gmra.mrb[0].mxu0 %v2176
    %v2696 = vpop.f32.mrb[0].mxu0
    %v2697 = vadd.f32 %v166, %v2696
    %v2698 = vpop.f32.mrb[0].mxu0
    %v2699 = vpop.f32.mrb[0].mxu0
    %v2700 = vadd.f32 %v166, %v2699
    %v2701 = vpop.f32.mrb[0].mxu0
    %2702 = vmatprep.mubr.bf16.mxu0 0
    %2703 = vmatmul.mubr.bf16.gmra.mrb[0].mxu0 %v2179
    %v2704 = vpop.f32.mrb[0].mxu0
    %v2705 = vadd.f32 %v166, %v2704
    %v2706 = vpop.f32.mrb[0].mxu0
    %v2707 = vpop.f32.mrb[0].mxu0
    %v2708 = vadd.f32 %v166, %v2707
    %v2709 = vpop.f32.mrb[0].mxu0
    %2710 = vmatprep.mubr.bf16.mxu0 0
    %2711 = vmatmul.mubr.bf16.gmra.mrb[0].mxu0 %v2182
    %v2712 = vpop.f32.mrb[0].mxu0
    %v2713 = vadd.f32 %v166, %v2712
    %v2714 = vpop.f32.mrb[0].mxu0
    %v2715 = vpop.f32.mrb[0].mxu0
    %v2716 = vadd.f32 %v166, %v2715
    %v2717 = vpop.f32.mrb[0].mxu0
    %2718 = vmatprep.mubr.bf16.mxu0 0
    %2719 = vmatmul.mubr.bf16.gmra.mrb[0].mxu0 %v2185
    %v2720 = vpop.f32.mrb[0].mxu0
    %v2721 = vadd.f32 %v166, %v2720
    %v2722 = vpop.f32.mrb[0].mxu0
    %v2723 = vpop.f32.mrb[0].mxu0
    %v2724 = vadd.f32 %v166, %v2723
    %v2725 = vpop.f32.mrb[0].mxu0
    %2726 = vmatprep.mubr.bf16.mxu0 0
    %2727 = vmatmul.mubr.bf16.gmra.mrb[0].mxu0 %v2188
    %v2728 = vpop.f32.mrb[0].mxu0
    %v2729 = vadd.f32 %v166, %v2728
    %v2730 = vpop.f32.mrb[0].mxu0
    %v2731 = vpop.f32.mrb[0].mxu0
    %v2732 = vadd.f32 %v166, %v2731
    %v2733 = vpop.f32.mrb[0].mxu0
    %2734 = vdwg.mxu0
    %v2735 = vmax.f32 %v2225, 0.0
    %v2736 = vmax.f32 %v2228, 0.0
    %v2737 = vmax.f32 %v2233, 0.0
    %v2738 = vmax.f32 %v2236, 0.0
    %v2739 = vmax.f32 %v2241, 0.0
    %v2740 = vmax.f32 %v2244, 0.0
    %v2741 = vmax.f32 %v2249, 0.0
    %v2742 = vmax.f32 %v2252, 0.0
    %v2743 = vmax.f32 %v2257, 0.0
    %v2744 = vmax.f32 %v2260, 0.0
    %v2745 = vmax.f32 %v2265, 0.0
    %v2746 = vmax.f32 %v2268, 0.0
    %v2747 = vmax.f32 %v2273, 0.0
    %v2748 = vmax.f32 %v2276, 0.0
    %v2749 = vmax.f32 %v2281, 0.0
    %v2750 = vmax.f32 %v2284, 0.0
    %v2751 = vmax.f32 %v2289, 0.0
    %v2752 = vmax.f32 %v2292, 0.0
    %v2753 = vmax.f32 %v2297, 0.0
    %v2754 = vmax.f32 %v2300, 0.0
    %v2755 = vmax.f32 %v2305, 0.0
    %v2756 = vmax.f32 %v2308, 0.0
    %v2757 = vmax.f32 %v2313, 0.0
    %v2758 = vmax.f32 %v2316, 0.0
    %v2759 = vmax.f32 %v2321, 0.0
    %v2760 = vmax.f32 %v2324, 0.0
    %v2761 = vmax.f32 %v2329, 0.0
    %v2762 = vmax.f32 %v2332, 0.0
    %v2763 = vmax.f32 %v2337, 0.0
    %v2764 = vmax.f32 %v2340, 0.0
    %v2765 = vmax.f32 %v2345, 0.0
    %v2766 = vmax.f32 %v2348, 0.0
    %v2767 = vmax.f32 %v2353, 0.0
    %v2768 = vmax.f32 %v2356, 0.0
    %v2769 = vmax.f32 %v2361, 0.0
    %v2770 = vmax.f32 %v2364, 0.0
    %v2771 = vmax.f32 %v2369, 0.0
    %v2772 = vmax.f32 %v2372, 0.0
    %v2773 = vmax.f32 %v2377, 0.0
    %v2774 = vmax.f32 %v2380, 0.0
    %v2775 = vmax.f32 %v2385, 0.0
    %v2776 = vmax.f32 %v2388, 0.0
    %v2777 = vmax.f32 %v2393, 0.0
    %v2778 = vmax.f32 %v2396, 0.0
    %v2779 = vmax.f32 %v2401, 0.0
    %v2780 = vmax.f32 %v2404, 0.0
    %v2781 = vmax.f32 %v2409, 0.0
    %v2782 = vmax.f32 %v2412, 0.0
    %v2783 = vmax.f32 %v2417, 0.0
    %v2784 = vmax.f32 %v2420, 0.0
    %v2785 = vmax.f32 %v2425, 0.0
    %v2786 = vmax.f32 %v2428, 0.0
    %v2787 = vmax.f32 %v2433, 0.0
    %v2788 = vmax.f32 %v2436, 0.0
    %v2789 = vmax.f32 %v2441, 0.0
    %v2790 = vmax.f32 %v2444, 0.0
    %v2791 = vmax.f32 %v2449, 0.0
    %v2792 = vmax.f32 %v2452, 0.0
    %v2793 = vmax.f32 %v2457, 0.0
    %v2794 = vmax.f32 %v2460, 0.0
    %v2795 = vmax.f32 %v2465, 0.0
    %v2796 = vmax.f32 %v2468, 0.0
    %v2797 = vmax.f32 %v2473, 0.0
    %v2798 = vmax.f32 %v2476, 0.0
    %v2799 = vmax.f32 %v2481, 0.0
    %v2800 = vmax.f32 %v2484, 0.0
    %v2801 = vmax.f32 %v2489, 0.0
    %v2802 = vmax.f32 %v2492, 0.0
    %v2803 = vmax.f32 %v2497, 0.0
    %v2804 = vmax.f32 %v2500, 0.0
    %v2805 = vmax.f32 %v2505, 0.0
    %v2806 = vmax.f32 %v2508, 0.0
    %v2807 = vmax.f32 %v2513, 0.0
    %v2808 = vmax.f32 %v2516, 0.0
    %v2809 = vmax.f32 %v2521, 0.0
    %v2810 = vmax.f32 %v2524, 0.0
    %v2811 = vmax.f32 %v2529, 0.0
    %v2812 = vmax.f32 %v2532, 0.0
    %v2813 = vmax.f32 %v2537, 0.0
    %v2814 = vmax.f32 %v2540, 0.0
    %v2815 = vmax.f32 %v2545, 0.0
    %v2816 = vmax.f32 %v2548, 0.0
    %v2817 = vmax.f32 %v2553, 0.0
    %v2818 = vmax.f32 %v2556, 0.0
    %v2819 = vmax.f32 %v2561, 0.0
    %v2820 = vmax.f32 %v2564, 0.0
    %v2821 = vmax.f32 %v2569, 0.0
    %v2822 = vmax.f32 %v2572, 0.0
    %v2823 = vmax.f32 %v2577, 0.0
    %v2824 = vmax.f32 %v2580, 0.0
    %v2825 = vmax.f32 %v2585, 0.0
    %v2826 = vmax.f32 %v2588, 0.0
    %v2827 = vmax.f32 %v2593, 0.0
    %v2828 = vmax.f32 %v2596, 0.0
    %v2829 = vmax.f32 %v2601, 0.0
    %v2830 = vmax.f32 %v2604, 0.0
    %v2831 = vmax.f32 %v2609, 0.0
    %v2832 = vmax.f32 %v2612, 0.0
    %v2833 = vmax.f32 %v2617, 0.0
    %v2834 = vmax.f32 %v2620, 0.0
    %v2835 = vmax.f32 %v2625, 0.0
    %v2836 = vmax.f32 %v2628, 0.0
    %v2837 = vmax.f32 %v2633, 0.0
    %v2838 = vmax.f32 %v2636, 0.0
    %v2839 = vmax.f32 %v2641, 0.0
    %v2840 = vmax.f32 %v2644, 0.0
    %v2841 = vmax.f32 %v2649, 0.0
    %v2842 = vmax.f32 %v2652, 0.0
    %v2843 = vmax.f32 %v2657, 0.0
    %v2844 = vmax.f32 %v2660, 0.0
    %v2845 = vmax.f32 %v2665, 0.0
    %v2846 = vmax.f32 %v2668, 0.0
    %v2847 = vmax.f32 %v2673, 0.0
    %v2848 = vmax.f32 %v2676, 0.0
    %v2849 = vmax.f32 %v2681, 0.0
    %v2850 = vmax.f32 %v2684, 0.0
    %v2851 = vmax.f32 %v2689, 0.0
    %v2852 = vmax.f32 %v2692, 0.0
    %v2853 = vmax.f32 %v2697, 0.0
    %v2854 = vmax.f32 %v2700, 0.0
    %v2855 = vmax.f32 %v2705, 0.0
    %v2856 = vmax.f32 %v2708, 0.0
    %v2857 = vmax.f32 %v2713, 0.0
    %v2858 = vmax.f32 %v2716, 0.0
    %v2859 = vmax.f32 %v2721, 0.0
    %v2860 = vmax.f32 %v2724, 0.0
    %v2861 = vmax.f32 %v2729, 0.0
    %v2862 = vmax.f32 %v2732, 0.0
    %v2863 = vadd.f32 %v2735, %v2736
    %v2864 = vadd.f32 %v2863, %v2737
    %v2865 = vadd.f32 %v2864, %v2738
    %v2866 = vadd.f32 %v2865, %v2739
    %v2867 = vadd.f32 %v2866, %v2740
    %v2868 = vadd.f32 %v2867, %v2741
    %v2869 = vadd.f32 %v2868, %v2742
    %v2870 = vadd.f32 %v2869, %v2743
    %v2871 = vadd.f32 %v2870, %v2744
    %v2872 = vadd.f32 %v2871, %v2745
    %v2873 = vadd.f32 %v2872, %v2746
    %v2874 = vadd.f32 %v2873, %v2747
    %v2875 = vadd.f32 %v2874, %v2748
    %v2876 = vadd.f32 %v2875, %v2749
    %v2877 = vadd.f32 %v2876, %v2750
    %v2878 = vrot.slane %v2877, 4
    %v2879 = vadd.f32 %v2877, %v2878
    %v2880 = vrot.slane %v2879, 2
    %v2881 = vadd.f32 %v2879, %v2880
    %v2882 = vrot.slane %v2881, 1
    %v2883 = vadd.f32 %v2881, %v2882
    %v2884 = vadd.f32 %v2751, %v2752
    %v2885 = vadd.f32 %v2884, %v2753
    %v2886 = vadd.f32 %v2885, %v2754
    %v2887 = vadd.f32 %v2886, %v2755
    %v2888 = vadd.f32 %v2887, %v2756
    %v2889 = vadd.f32 %v2888, %v2757
    %v2890 = vadd.f32 %v2889, %v2758
    %v2891 = vadd.f32 %v2890, %v2759
    %v2892 = vadd.f32 %v2891, %v2760
    %v2893 = vadd.f32 %v2892, %v2761
    %v2894 = vadd.f32 %v2893, %v2762
    %v2895 = vadd.f32 %v2894, %v2763
    %v2896 = vadd.f32 %v2895, %v2764
    %v2897 = vadd.f32 %v2896, %v2765
    %v2898 = vadd.f32 %v2897, %v2766
    %v2899 = vrot.slane %v2898, 4
    %v2900 = vadd.f32 %v2898, %v2899
    %v2901 = vrot.slane %v2900, 2
    %v2902 = vadd.f32 %v2900, %v2901
    %v2903 = vrot.slane %v2902, 1
    %v2904 = vadd.f32 %v2902, %v2903
    %v2905 = vadd.f32 %v2767, %v2768
    %v2906 = vadd.f32 %v2905, %v2769
    %v2907 = vadd.f32 %v2906, %v2770
    %v2908 = vadd.f32 %v2907, %v2771
    %v2909 = vadd.f32 %v2908, %v2772
    %v2910 = vadd.f32 %v2909, %v2773
    %v2911 = vadd.f32 %v2910, %v2774
    %v2912 = vadd.f32 %v2911, %v2775
    %v2913 = vadd.f32 %v2912, %v2776
    %v2914 = vadd.f32 %v2913, %v2777
    %v2915 = vadd.f32 %v2914, %v2778
    %v2916 = vadd.f32 %v2915, %v2779
    %v2917 = vadd.f32 %v2916, %v2780
    %v2918 = vadd.f32 %v2917, %v2781
    %v2919 = vadd.f32 %v2918, %v2782
    %v2920 = vrot.slane %v2919, 4
    %v2921 = vadd.f32 %v2919, %v2920
    %v2922 = vrot.slane %v2921, 2
    %v2923 = vadd.f32 %v2921, %v2922
    %v2924 = vrot.slane %v2923, 1
    %v2925 = vadd.f32 %v2923, %v2924
    %v2926 = vadd.f32 %v2783, %v2784
    %v2927 = vadd.f32 %v2926, %v2785
    %v2928 = vadd.f32 %v2927, %v2786
    %v2929 = vadd.f32 %v2928, %v2787
    %v2930 = vadd.f32 %v2929, %v2788
    %v2931 = vadd.f32 %v2930, %v2789
    %v2932 = vadd.f32 %v2931, %v2790
    %v2933 = vadd.f32 %v2932, %v2791
    %v2934 = vadd.f32 %v2933, %v2792
    %v2935 = vadd.f32 %v2934, %v2793
    %v2936 = vadd.f32 %v2935, %v2794
    %v2937 = vadd.f32 %v2936, %v2795
    %v2938 = vadd.f32 %v2937, %v2796
    %v2939 = vadd.f32 %v2938, %v2797
    %v2940 = vadd.f32 %v2939, %v2798
    %v2941 = vrot.slane %v2940, 4
    %v2942 = vadd.f32 %v2940, %v2941
    %v2943 = vrot.slane %v2942, 2
    %v2944 = vadd.f32 %v2942, %v2943
    %v2945 = vrot.slane %v2944, 1
    %v2946 = vadd.f32 %v2944, %v2945
    %v2947 = vadd.f32 %v2799, %v2800
    %v2948 = vadd.f32 %v2947, %v2801
    %v2949 = vadd.f32 %v2948, %v2802
    %v2950 = vadd.f32 %v2949, %v2803
    %v2951 = vadd.f32 %v2950, %v2804
    %v2952 = vadd.f32 %v2951, %v2805
    %v2953 = vadd.f32 %v2952, %v2806
    %v2954 = vadd.f32 %v2953, %v2807
    %v2955 = vadd.f32 %v2954, %v2808
    %v2956 = vadd.f32 %v2955, %v2809
    %v2957 = vadd.f32 %v2956, %v2810
    %v2958 = vadd.f32 %v2957, %v2811
    %v2959 = vadd.f32 %v2958, %v2812
    %v2960 = vadd.f32 %v2959, %v2813
    %v2961 = vadd.f32 %v2960, %v2814
    %v2962 = vrot.slane %v2961, 4
    %v2963 = vadd.f32 %v2961, %v2962
    %v2964 = vrot.slane %v2963, 2
    %v2965 = vadd.f32 %v2963, %v2964
    %v2966 = vrot.slane %v2965, 1
    %v2967 = vadd.f32 %v2965, %v2966
    %v2968 = vadd.f32 %v2815, %v2816
    %v2969 = vadd.f32 %v2968, %v2817
    %v2970 = vadd.f32 %v2969, %v2818
    %v2971 = vadd.f32 %v2970, %v2819
    %v2972 = vadd.f32 %v2971, %v2820
    %v2973 = vadd.f32 %v2972, %v2821
    %v2974 = vadd.f32 %v2973, %v2822
    %v2975 = vadd.f32 %v2974, %v2823
    %v2976 = vadd.f32 %v2975, %v2824
    %v2977 = vadd.f32 %v2976, %v2825
    %v2978 = vadd.f32 %v2977, %v2826
    %v2979 = vadd.f32 %v2978, %v2827
    %v2980 = vadd.f32 %v2979, %v2828
    %v2981 = vadd.f32 %v2980, %v2829
    %v2982 = vadd.f32 %v2981, %v2830
    %v2983 = vrot.slane %v2982, 4
    %v2984 = vadd.f32 %v2982, %v2983
    %v2985 = vrot.slane %v2984, 2
    %v2986 = vadd.f32 %v2984, %v2985
    %v2987 = vrot.slane %v2986, 1
    %v2988 = vadd.f32 %v2986, %v2987
    %v2989 = vadd.f32 %v2831, %v2832
    %v2990 = vadd.f32 %v2989, %v2833
    %v2991 = vadd.f32 %v2990, %v2834
    %v2992 = vadd.f32 %v2991, %v2835
    %v2993 = vadd.f32 %v2992, %v2836
    %v2994 = vadd.f32 %v2993, %v2837
    %v2995 = vadd.f32 %v2994, %v2838
    %v2996 = vadd.f32 %v2995, %v2839
    %v2997 = vadd.f32 %v2996, %v2840
    %v2998 = vadd.f32 %v2997, %v2841
    %v2999 = vadd.f32 %v2998, %v2842
    %v3000 = vadd.f32 %v2999, %v2843
    %v3001 = vadd.f32 %v3000, %v2844
    %v3002 = vadd.f32 %v3001, %v2845
    %v3003 = vadd.f32 %v3002, %v2846
    %v3004 = vrot.slane %v3003, 4
    %v3005 = vadd.f32 %v3003, %v3004
    %v3006 = vrot.slane %v3005, 2
    %v3007 = vadd.f32 %v3005, %v3006
    %v3008 = vrot.slane %v3007, 1
    %v3009 = vadd.f32 %v3007, %v3008
    %v3010 = vadd.f32 %v2847, %v2848
    %v3011 = vadd.f32 %v3010, %v2849
    %v3012 = vadd.f32 %v3011, %v2850
    %v3013 = vadd.f32 %v3012, %v2851
    %v3014 = vadd.f32 %v3013, %v2852
    %v3015 = vadd.f32 %v3014, %v2853
    %v3016 = vadd.f32 %v3015, %v2854
    %v3017 = vadd.f32 %v3016, %v2855
    %v3018 = vadd.f32 %v3017, %v2856
    %v3019 = vadd.f32 %v3018, %v2857
    %v3020 = vadd.f32 %v3019, %v2858
    %v3021 = vadd.f32 %v3020, %v2859
    %v3022 = vadd.f32 %v3021, %v2860
    %v3023 = vadd.f32 %v3022, %v2861
    %v3024 = vadd.f32 %v3023, %v2862
    %v3025 = vrot.slane %v3024, 4
    %v3026 = vadd.f32 %v3024, %v3025
    %v3027 = vrot.slane %v3026, 2
    %v3028 = vadd.f32 %v3026, %v3027
    %v3029 = vrot.slane %v3028, 1
    %v3030 = vadd.f32 %v3028, %v3029
    %v3031 = vadd.f32 %v1541, %v2883
    %v3032 = vadd.f32 %v1542, %v2904
    %v3033 = vadd.f32 %v1543, %v2925
    %v3034 = vadd.f32 %v1544, %v2946
    %v3035 = vadd.f32 %v1545, %v2967
    %v3036 = vadd.f32 %v1546, %v2988
    %v3037 = vadd.f32 %v1547, %v3009
    %v3038 = vadd.f32 %v1548, %v3030
    %vm3047 = vcmask 1041409
    %v3048 = vsel %vm3047, %v3032, %v3031
    %vm3049 = vcmask 1042434
    %v3050 = vsel %vm3049, %v3033, %v3048
    %vm3051 = vcmask 1043459
    %v3052 = vsel %vm3051, %v3034, %v3050
    %vm3053 = vcmask 1044484
    %v3054 = vsel %vm3053, %v3035, %v3052
    %vm3055 = vcmask 1045509
    %v3056 = vsel %vm3055, %v3036, %v3054
    %vm3057 = vcmask 1046534
    %v3058 = vsel %vm3057, %v3037, %v3056
    %vm3059 = vcmask 1047559
    %v3060 = vsel %vm3059, %v3038, %v3058
    %v3062 = vadd.f32 %v33, %v3060
    %3063 = vst [vmem:[#allocation2] sm:$0xff] %v3062
    // Predicated region
    $region26: #{tpu_custom_call.1} parent=1 // pred_check
      %p3064 = pneg %p22
    $region27: #{tpu_custom_call.1} parent=1 // pred_check_branch
      %3066 = sbr.rel (%p3064) target = $region29
    $region28: #{tpu_custom_call.1} parent=1 // pred_region
      %v3067 = vld [vmem:[#allocation2] sm:$0xff]
      %v3068 = vld [vmem:[%s3] sm:$0xff]
      %v3069 = vld [vmem:[%s3 + $0x8] sm:$0xff]
      %v3070 = vld [vmem:[%s3 + $0x10] sm:$0xff]
      %v3071 = vld [vmem:[%s3 + $0x18] sm:$0xff]
      %v3072 = vld [vmem:[%s3 + $0x20] sm:$0xff]
      %v3073 = vld [vmem:[%s3 + $0x28] sm:$0xff]
      %v3074 = vld [vmem:[%s3 + $0x30] sm:$0xff]
      %v3075 = vld [vmem:[%s3 + $0x38] sm:$0xff]
      %v3076 = vld [vmem:[%s3 + $0x40] sm:$0xff]
      %v3077 = vld [vmem:[%s3 + $0x48] sm:$0xff]
      %v3078 = vld [vmem:[%s3 + $0x50] sm:$0xff]
      %v3079 = vld [vmem:[%s3 + $0x58] sm:$0xff]
      %v3080 = vld [vmem:[%s3 + $0x60] sm:$0xff]
      %v3081 = vld [vmem:[%s3 + $0x68] sm:$0xff]
      %v3082 = vld [vmem:[%s3 + $0x70] sm:$0xff]
      %v3083 = vld [vmem:[%s3 + $0x78] sm:$0xff]
      %v3084 = vld [vmem:[%s4] sm:$0x1]
      %v3086 = vlaneseq
      %v3087 = vshrl.u32 %v3086, 7
      %v3088 = vsub.s32 0, %v3087
      %v3089 = vrot.slane %v3084, %v3088
      %3091 = vmatprep.subr.mxu0 0.0
      %3092 = vmatpush1.msra.mxu0 %v3068
      %3093 = vmatprep.subr.mxu0 0.0
      %3094 = vmatpush1.msra.mxu0 %v3069
      %3095 = vmatprep.subr.mxu0 0.0
      %3096 = vmatpush1.msra.mxu0 %v3070
      %3097 = vmatprep.subr.mxu0 0.0
      %3098 = vmatpush1.msra.mxu0 %v3071
      %3099 = vmatprep.subr.mxu0 0.0
      %3100 = vmatpush1.msra.mxu0 %v3072
      %3101 = vmatprep.subr.mxu0 0.0
      %3102 = vmatpush1.msra.mxu0 %v3073
      %3103 = vmatprep.subr.mxu0 0.0
      %3104 = vmatpush1.msra.mxu0 %v3074
      %3105 = vmatprep.subr.mxu0 0.0
      %3106 = vmatpush1.msra.mxu0 %v3075
      %3107 = vmatprep.subr.mxu0 0.0
      %3108 = vmatpush1.msra.mxu0 %v3076
      %3109 = vmatprep.subr.mxu0 0.0
      %3110 = vmatpush1.msra.mxu0 %v3077
      %3111 = vmatprep.subr.mxu0 0.0
      %3112 = vmatpush1.msra.mxu0 %v3078
      %3113 = vmatprep.subr.mxu0 0.0
      %3114 = vmatpush1.msra.mxu0 %v3079
      %3115 = vmatprep.subr.mxu0 0.0
      %3116 = vmatpush1.msra.mxu0 %v3080
      %3117 = vmatprep.subr.mxu0 0.0
      %3118 = vmatpush1.msra.mxu0 %v3081
      %3119 = vmatprep.subr.mxu0 0.0
      %3120 = vmatpush1.msra.mxu0 %v3082
      %3121 = vmatprep.subr.mxu0 0.0
      %3122 = vmatpush1.msra.mxu0 %v3083
      %3123 = vmatprep.subr.mxu0 0.0
      %3124 = vmatpush1.msra.mxu0 0.0
      %3125 = vmatprep.subr.mxu0 0.0
      %3126 = vmatpush1.msra.mxu0 0.0
      %3127 = vmatprep.subr.mxu0 0.0
      %3128 = vmatpush1.msra.mxu0 0.0
      %3129 = vmatprep.subr.mxu0 0.0
      %3130 = vmatpush1.msra.mxu0 0.0
      %3131 = vmatprep.subr.mxu0 0.0
      %3132 = vmatpush1.msra.mxu0 0.0
      %3133 = vmatprep.subr.mxu0 0.0
      %3134 = vmatpush1.msra.mxu0 0.0
      %3135 = vmatprep.subr.mxu0 0.0
      %3136 = vmatpush1.msra.mxu0 0.0
      %3137 = vmatprep.subr.mxu0 0.0
      %3138 = vmatpush1.msra.mxu0 0.0
      %3139 = vmatprep.subr.mxu0 0.0
      %3140 = vmatpush1.msra.mxu0 0.0
      %3141 = vmatprep.subr.mxu0 0.0
      %3142 = vmatpush1.msra.mxu0 0.0
      %3143 = vmatprep.subr.mxu0 0.0
      %3144 = vmatpush1.msra.mxu0 0.0
      %3145 = vmatprep.subr.mxu0 0.0
      %3146 = vmatpush1.msra.mxu0 0.0
      %3147 = vmatprep.subr.mxu0 0.0
      %3148 = vmatpush1.msra.mxu0 0.0
      %3149 = vmatprep.subr.mxu0 0.0
      %3150 = vmatpush1.msra.mxu0 0.0
      %3151 = vmatprep.subr.mxu0 0.0
      %3152 = vmatpush1.msra.mxu0 0.0
      %3153 = vmatprep.subr.mxu0 0.0
      %3154 = vmatpush1.msra.mxu0 0.0
      %3155 = vmatprep.mubr.f32.mxu0 0.0
      %3156 = vmatmul.mubr.f32.gmra.mrb[0].mxu0 %v3067
      %v3157 = vpop.f32.mrb[0].mxu0
      %v3158 = vadd.f32 %v3089, %v3157
      %v3159 = vpop.f32.mrb[0].mxu0
      %3160 = vdwg.mxu0
      %3161 = vmax.xlane.f32.xlu0 %v3158
      %v3162 = vpop.xlane.xlu0 %3161
      %v3163 = vsub.f32 %v3158, %v3162
      %v3164 = vmul.f32 %v3163, 1.442695
      %v3165 = vpow.pop %v3164
      %3166 = vadd.xlane.f32.xlu0 %v3165
      %v3167 = vpop.xlane.xlu0 %3166
      %v3168 = vrcp.pop %v3167
      %v3169 = vmul.f32 %v3165, %v3168
      %3170 = vst [vmem:[#allocation3] sm:$0xff] %v3169
    $region29: #{tpu_custom_call.1} parent=1 // pred_fallthru
      _
    // Predicated region
    $region30: #{tpu_custom_call.1} parent=1 // pred_check
      _
    $region31: #{tpu_custom_call.1} parent=1 // pred_check_branch
      %3172 = sbr.rel (0) target = $region33
    $region32: #{tpu_custom_call.1} parent=1 // pred_region
      %s3174 = ssub.s32 128, 128
      %3175 = vsyncadd [#allocation4], %s3174
      %s3177 = sshll.u32 [#allocation3], 4
      %s3178 = int_to_ptr.vmem [resolvable:$true] %s3177
      %3180 = dma.vmem_to_hbm [thread:$0]  %s3178, 128, %s5, [#allocation4]
    $region33: #{tpu_custom_call.1} parent=1 // pred_fallthru
      _
    // Predicated region
    $region34: #{tpu_custom_call.1} parent=1 // pred_check
      _
    $region35: #{tpu_custom_call.1} parent=1 // pred_check_branch
      %3182 = sbr.rel (0) target = $region37
    $region36: #{tpu_custom_call.1} parent=1 // pred_region
      %3183 = dma.done [#allocation4], 128
    $region37: #{tpu_custom_call.1} parent=1 // pred_fallthru
      _
    %3184 = vsyncpa [#allocation4], 1

</llo_original>
